<compile_context>
chip_gen: v6e
topology: v6e:2x2x1
jax: 0.10.0
libtpu: 0.0.40
codegen_flags: <defaults>
</compile_context>

<pallas_src>
import numpy as np
import jax
import jax.numpy as jnp
from jax import lax
from jax.experimental import pallas as pl
from jax.experimental.pallas import tpu as pltpu


def _upconv_transpose_kernel(x_ref, xh_ref, wee_ref, weo_ref, woe_ref, woo_ref, b_ref, o_ref):
    # x_ref  : (1, tH, W, Cp)   input row-tile (native dtype)
    # xh_ref : (1, 1,  W, Cp)   halo = first row of the next tile (garbage for last tile)
    # w*_ref : (k*Cp, Cp)       per-parity weights, K-concatenated in order [x_w, x, x_h, x_hw]
    # b_ref  : (1, Cp)          bias (float32)
    # o_ref  : (1, tH, 2, W, 2*Cp)  interleaved output: [i, row_parity, j, col_parity*Cp + c]
    tH, W, Cp = x_ref.shape[1], x_ref.shape[2], x_ref.shape[3]
    R = tH * W
    dt_in = x_ref.dtype
    odt = o_ref.dtype

    x = x_ref[0].reshape(R, Cp)                           # (R, Cp), native dtype
    halo = xh_ref[0, 0]                                   # (W, Cp)

    # Zero the halo when this is the last row tile (image bottom boundary).
    is_last = pl.program_id(1) == pl.num_programs(1) - 1
    halo = halo * jnp.where(is_last, 0.0, 1.0).astype(dt_in)

    # Extended flattened tile: main rows, halo row, plus one pad row so the +1 / +W+1
    # slices below stay in bounds (values read from it are always masked out).
    pad = jnp.zeros((1, Cp), dt_in)
    xe = jnp.concatenate([x, halo, pad], axis=0)          # (R + W + 1, Cp)

    # Destination column index j = r % W; shifts along W are zero at j == W - 1.
    j = lax.broadcasted_iota(jnp.int32, (R, Cp), 0) % W
    keep = j < (W - 1)
    zero = jnp.zeros((R, Cp), dt_in)

    v_x = xe[0:R]                                         # x[i,   j]
    v_h = xe[W:W + R]                                     # x[i+1, j]
    v_w = jnp.where(keep, xe[1:R + 1], zero)              # x[i,   j+1]
    v_hw = jnp.where(keep, xe[W + 1:W + R + 1], zero)     # x[i+1, j+1]

    # K-concatenated operand, lane blocks ordered [x_w, x, x_h, x_hw].
    xcat = jnp.concatenate([v_w, v_x, v_h, v_hw], axis=-1)     # (R, 4*Cp)

    b = b_ref[...]                                        # (1, Cp) f32, broadcasts over rows

    # (even row, even col): x @ W11
    ee = jnp.dot(xcat[:, Cp:2 * Cp], wee_ref[...], preferred_element_type=jnp.float32) + b
    o_ref[0, :, 0, :, 0:Cp] = ee.reshape(tH, W, Cp).astype(odt)
    # (even row, odd col): x_w @ W10 + x @ W12
    eo = jnp.dot(xcat[:, 0:2 * Cp], weo_ref[...], preferred_element_type=jnp.float32) + b
    o_ref[0, :, 0, :, Cp:2 * Cp] = eo.reshape(tH, W, Cp).astype(odt)
    # (odd row, even col): x @ W21 + x_h @ W01
    oe = jnp.dot(xcat[:, Cp:3 * Cp], woe_ref[...], preferred_element_type=jnp.float32) + b
    o_ref[0, :, 1, :, 0:Cp] = oe.reshape(tH, W, Cp).astype(odt)
    # (odd row, odd col): x_w @ W20 + x @ W22 + x_h @ W02 + x_hw @ W00
    oo = jnp.dot(xcat, woo_ref[...], preferred_element_type=jnp.float32) + b
    o_ref[0, :, 1, :, Cp:2 * Cp] = oo.reshape(tH, W, Cp).astype(odt)


def up_conv_transpose(x_nchw, weight_pt, bias, *, tile_h=8):
    """Forward of UpConvTranspose (PyTorch semantics: NCHW in / NCHW out).

    x_nchw:    (N, C, H, W)
    weight_pt: (C_in, C_out, 3, 3)   PyTorch ConvTranspose2d weight layout
    bias:      (C_out,)
    returns    (N, C, 2H, 2W)
    """
    N, C, H, W = x_nchw.shape
    dt = x_nchw.dtype
    Cp = ((C + 127) // 128) * 128                # lane-dense channel padding

    # Row tile that divides H (keeps per-step VMEM small and gives the grid a 2nd axis).
    tH = max(1, min(H, tile_h))
    while H % tH:
        tH -= 1

    # Input: NCHW -> NHWC, pad channels with zeros.
    x_nhwc = jnp.transpose(x_nchw, (0, 2, 3, 1))                          # (N, H, W, C)
    x_p = jnp.pad(x_nhwc, ((0, 0), (0, 0), (0, 0), (0, Cp - C)))          # (N, H, W, Cp)

    # Weights: (Cin, Cout, kh, kw) -> per-tap (Cin, Cout), zero-padded to (Cp, Cp),
    # then K-concatenated per parity in the order [x_w, x, x_h, x_hw] used by the kernel.
    w = jnp.transpose(weight_pt, (2, 3, 0, 1)).astype(dt)                 # (3, 3, Cin, Cout)
    w = jnp.pad(w, ((0, 0), (0, 0), (0, Cp - C), (0, Cp - C)))            # (3, 3, Cp, Cp)
    w_ee = w[1, 1]                                                        # (Cp, Cp)
    w_eo = jnp.concatenate([w[1, 0], w[1, 2]], axis=0)                    # (2Cp, Cp)
    w_oe = jnp.concatenate([w[2, 1], w[0, 1]], axis=0)                    # (2Cp, Cp)
    w_oo = jnp.concatenate([w[2, 0], w[2, 2], w[0, 2], w[0, 0]], axis=0)  # (4Cp, Cp)

    b2 = jnp.pad(bias.astype(jnp.float32), (0, Cp - C)).reshape(1, Cp)

    grid = (N, H // tH)
    out5 = pl.pallas_call(
        _upconv_transpose_kernel,
        out_shape=jax.ShapeDtypeStruct((N, H, 2, W, 2 * Cp), dt),
        grid=grid,
        in_specs=[
            pl.BlockSpec((1, tH, W, Cp), lambda n, i: (n, i, 0, 0)),
            # 1-row halo: first row of the next tile (clamped for the last tile, masked in-kernel).
            pl.BlockSpec((1, 1, W, Cp),
                         lambda n, i: (n, jnp.minimum((i + 1) * tH, H - 1), 0, 0)),
            pl.BlockSpec((Cp, Cp), lambda n, i: (0, 0)),
            pl.BlockSpec((2 * Cp, Cp), lambda n, i: (0, 0)),
            pl.BlockSpec((2 * Cp, Cp), lambda n, i: (0, 0)),
            pl.BlockSpec((4 * Cp, Cp), lambda n, i: (0, 0)),
            pl.BlockSpec((1, Cp), lambda n, i: (0, 0)),
        ],
        out_specs=pl.BlockSpec((1, tH, 2, W, 2 * Cp), lambda n, i: (n, i, 0, 0, 0)),
        compiler_params=pltpu.CompilerParams(
            dimension_semantics=("parallel", "parallel"),
            vmem_limit_bytes=32 * 1024 * 1024),
    )(x_p, x_p, w_ee, w_eo, w_oe, w_oo, b2)

    # (N, H, 2, W, 2*Cp) -> (N, 2H, 2W, Cp) is a pure (contiguous) reshape: the kernel already
    # wrote the interleaved order. Then slice off channel padding and go back to NCHW.
    out_nhwc = out5.reshape(N, 2 * H, 2 * W, Cp)[..., :C]
    return jnp.transpose(out_nhwc, (0, 3, 1, 2))


def _ref_conv_transpose(x, w_pt, b):
    """Direct PyTorch-semantics reference (numpy), for verification."""
    x = np.asarray(x, np.float32)
    w_pt = np.asarray(w_pt, np.float32)
    b = np.asarray(b, np.float32)
    N, Cin, H, W = x.shape
    Cout = w_pt.shape[1]
    OH, OW = 2 * H, 2 * W
    out = np.zeros((N, Cout, OH, OW), dtype=np.float32)
    for ih in range(H):
        for iw in range(W):
            for kh in range(3):
                for kw in range(3):
                    oh = 2 * ih - 1 + kh
                    ow = 2 * iw - 1 + kw
                    if 0 <= oh < OH and 0 <= ow < OW:
                        out[:, :, oh, ow] += np.einsum(
                            "ni,io->no", x[:, :, ih, iw], w_pt[:, :, kh, kw])
    return out + b[None, :, None, None]


if __name__ == "__main__":
    key = jax.random.PRNGKey(0)
    k1, k2, k3 = jax.random.split(key, 3)

    N, C, H, W = 2, 4, 16, 16
    x = jax.random.normal(k1, (N, C, H, W), dtype=jnp.float32)

    # Deterministic parameter init, same shapes as nn.ConvTranspose2d(C, C, 3).
    fan_in = C * 3 * 3
    bound = float(1.0 / np.sqrt(fan_in))
    weight = jax.random.uniform(k2, (C, C, 3, 3), minval=-bound, maxval=bound,
                                dtype=jnp.float32)
    bias = jax.random.uniform(k3, (C,), minval=-bound, maxval=bound, dtype=jnp.float32)

    out = up_conv_transpose(x, weight, bias)
    out = jax.block_until_ready(out)
    assert out.shape == (N, C, 2 * H, 2 * W), out.shape

    ref = _ref_conv_transpose(x, weight, bias)
    np.testing.assert_allclose(np.asarray(out), ref, rtol=1e-4, atol=1e-4)
    print("KERNEL_OK")
</pallas_src>

<mosaic_0001>
module attributes {stable_mosaic.version = 11 : i64} {
  func.func @_upconv_transpose_kernel(%arg0: i32, %arg1: i32, %arg2: memref<1x8x16x128xf32, #tpu.memory_space<vmem>>, %arg3: memref<1x1x16x128xf32, #tpu.memory_space<vmem>>, %arg4: memref<128x128xf32, #tpu.memory_space<vmem>>, %arg5: memref<256x128xf32, #tpu.memory_space<vmem>>, %arg6: memref<256x128xf32, #tpu.memory_space<vmem>>, %arg7: memref<512x128xf32, #tpu.memory_space<vmem>>, %arg8: memref<1x128xf32, #tpu.memory_space<vmem>>, %arg9: memref<1x8x2x16x256xf32, #tpu.memory_space<vmem>>) attributes {dimension_semantics = [#tpu.dimension_semantics<parallel>, #tpu.dimension_semantics<parallel>], iteration_bounds = array<i64: 2, 2>, scalar_prefetch = 0 : i64, scratch_operands = 0 : i64, tpu.core_type = #tpu.core_type<tc>, window_params = [{transform_indices = @transform_0, window_bounds = array<i64: 1, 8, 16, 128>}, {transform_indices = @transform_1, window_bounds = array<i64: 1, 1, 16, 128>}, {pipeline_mode = #tpu.pipeline_mode<synchronous>, transform_indices = @transform_2, window_bounds = array<i64: 128, 128>}, {pipeline_mode = #tpu.pipeline_mode<synchronous>, transform_indices = @transform_3, window_bounds = array<i64: 256, 128>}, {pipeline_mode = #tpu.pipeline_mode<synchronous>, transform_indices = @transform_4, window_bounds = array<i64: 256, 128>}, {pipeline_mode = #tpu.pipeline_mode<synchronous>, transform_indices = @transform_5, window_bounds = array<i64: 512, 128>}, {pipeline_mode = #tpu.pipeline_mode<synchronous>, transform_indices = @transform_6, window_bounds = array<i64: 1, 128>}, {transform_indices = @transform_7, window_bounds = array<i64: 1, 8, 2, 16, 256>}]} {
    %c0 = arith.constant 0 : index
    %c0_0 = arith.constant 0 : index
    %c0_1 = arith.constant 0 : index
    %c0_2 = arith.constant 0 : index
    %0 = vector.load %arg2[%c0, %c0_0, %c0_1, %c0_2] : memref<1x8x16x128xf32, #tpu.memory_space<vmem>>, vector<1x8x16x128xf32>
    %1 = vector.shape_cast %0 : vector<1x8x16x128xf32> to vector<8x16x128xf32>
    %2 = vector.shape_cast %1 : vector<8x16x128xf32> to vector<128x128xf32>
    %c0_3 = arith.constant 0 : index
    %c0_4 = arith.constant 0 : index
    %c0_5 = arith.constant 0 : index
    %c0_6 = arith.constant 0 : index
    %3 = vector.load %arg3[%c0_3, %c0_4, %c0_5, %c0_6] : memref<1x1x16x128xf32, #tpu.memory_space<vmem>>, vector<1x1x16x128xf32>
    %4 = vector.shape_cast %3 : vector<1x1x16x128xf32> to vector<16x128xf32>
    %c1_i32 = arith.constant 1 : i32
    %5 = arith.cmpi eq, %arg1, %c1_i32 : i32
    %cst = arith.constant 0.000000e+00 : f32
    %cst_7 = arith.constant 1.000000e+00 : f32
    %6 = arith.select %5, %cst, %cst_7 : f32
    %7 = vector.broadcast %6 : f32 to vector<16x128xf32>
    %8 = arith.mulf %4, %7 : vector<16x128xf32>
    %cst_8 = arith.constant 0.000000e+00 : f32
    %9 = vector.broadcast %cst_8 : f32 to vector<1x128xf32>
    %10 = tpu.concatenate %2, %8, %9 in 0 : vector<128x128xf32>, vector<16x128xf32>, vector<1x128xf32> -> vector<145x128xf32>
    %11 = tpu.iota {dimensions = array<i32: 0>} : vector<128x128xi32>
    %c16_i32 = arith.constant 16 : i32
    %c0_i32 = arith.constant 0 : i32
    %12 = arith.cmpi eq, %c16_i32, %c0_i32 : i32
    %c1_i32_9 = arith.constant 1 : i32
    %13 = arith.select %12, %c1_i32_9, %c16_i32 : i32
    %14 = vector.broadcast %13 : i32 to vector<128x128xi32>
    %15 = arith.remsi %11, %14 : vector<128x128xi32>
    %c0_i32_10 = arith.constant 0 : i32
    %16 = vector.broadcast %c0_i32_10 : i32 to vector<128x128xi32>
    %17 = arith.cmpi ne, %15, %16 : vector<128x128xi32>
    %c0_i32_11 = arith.constant 0 : i32
    %18 = vector.broadcast %c0_i32_11 : i32 to vector<128x128xi32>
    %19 = arith.cmpi slt, %15, %18 : vector<128x128xi32>
    %c0_i32_12 = arith.constant 0 : i32
    %20 = arith.cmpi slt, %13, %c0_i32_12 : i32
    %21 = vector.broadcast %20 : i1 to vector<128x128xi1>
    %22 = vector.broadcast %21 : vector<128x128xi1> to vector<128x128xi1>
    %23 = arith.xori %19, %22 : vector<128x128xi1>
    %24 = arith.andi %23, %17 : vector<128x128xi1>
    %25 = vector.broadcast %13 : i32 to vector<128x128xi32>
    %26 = arith.addi %15, %25 : vector<128x128xi32>
    %27 = arith.select %24, %26, %15 : vector<128x128xi1>, vector<128x128xi32>
    %c15_i32 = arith.constant 15 : i32
    %28 = vector.broadcast %c15_i32 : i32 to vector<128x128xi32>
    %29 = arith.cmpi slt, %27, %28 : vector<128x128xi32>
    %cst_13 = arith.constant 0.000000e+00 : f32
    %30 = vector.broadcast %cst_13 : f32 to vector<128x128xf32>
    %31 = vector.extract_strided_slice %10 {offsets = [0, 0], sizes = [128, 128], strides = [1, 1]} : vector<145x128xf32> to vector<128x128xf32>
    %32 = vector.extract_strided_slice %10 {offsets = [16, 0], sizes = [128, 128], strides = [1, 1]} : vector<145x128xf32> to vector<128x128xf32>
    %33 = vector.extract_strided_slice %10 {offsets = [1, 0], sizes = [128, 128], strides = [1, 1]} : vector<145x128xf32> to vector<128x128xf32>
    %34 = arith.select %29, %33, %30 : vector<128x128xi1>, vector<128x128xf32>
    %35 = vector.extract_strided_slice %10 {offsets = [17, 0], sizes = [128, 128], strides = [1, 1]} : vector<145x128xf32> to vector<128x128xf32>
    %36 = arith.select %29, %35, %30 : vector<128x128xi1>, vector<128x128xf32>
    %37 = tpu.concatenate %34, %31, %32, %36 in 1 : vector<128x128xf32>, vector<128x128xf32>, vector<128x128xf32>, vector<128x128xf32> -> vector<128x512xf32>
    %c0_14 = arith.constant 0 : index
    %c0_15 = arith.constant 0 : index
    %38 = vector.load %arg8[%c0_14, %c0_15] : memref<1x128xf32, #tpu.memory_space<vmem>>, vector<1x128xf32>
    %39 = vector.extract_strided_slice %37 {offsets = [0, 128], sizes = [128, 128], strides = [1, 1]} : vector<128x512xf32> to vector<128x128xf32>
    %c0_16 = arith.constant 0 : index
    %c0_17 = arith.constant 0 : index
    %40 = vector.load %arg4[%c0_16, %c0_17] : memref<128x128xf32, #tpu.memory_space<vmem>>, vector<128x128xf32>
    %cst_18 = arith.constant dense<0.000000e+00> : vector<128x128xf32>
    %41 = tpu.matmul %39, %40, %cst_18 {dimension_numbers = #tpu.dot_dimension_numbers<[1], [0], [0], [1], [0, 0, 1, 1], [], []>} : vector<128x128xf32>, vector<128x128xf32>, vector<128x128xf32> -> vector<128x128xf32>
    %42 = vector.broadcast %38 : vector<1x128xf32> to vector<128x128xf32>
    %43 = arith.addf %41, %42 : vector<128x128xf32>
    %44 = vector.shape_cast %43 : vector<128x128xf32> to vector<8x16x128xf32>
    %c0_19 = arith.constant 0 : index
    %c0_20 = arith.constant 0 : index
    %c0_21 = arith.constant 0 : index
    %c0_22 = arith.constant 0 : index
    %c0_23 = arith.constant 0 : index
    %45 = vector.load %arg9[%c0_19, %c0_20, %c0_21, %c0_22, %c0_23] : memref<1x8x2x16x256xf32, #tpu.memory_space<vmem>>, vector<1x8x1x16x128xf32>
    %46 = vector.shape_cast %45 : vector<1x8x1x16x128xf32> to vector<8x16x128xf32>
    %47 = vector.shape_cast %44 : vector<8x16x128xf32> to vector<1x8x1x16x128xf32>
    tpu.vector_store %arg9[%c0_19, %c0_20, %c0_21, %c0_22, %c0_23], %47 {strides = array<i32>} : memref<1x8x2x16x256xf32, #tpu.memory_space<vmem>>, vector<1x8x1x16x128xf32>,
    %48 = vector.extract_strided_slice %37 {offsets = [0, 0], sizes = [128, 256], strides = [1, 1]} : vector<128x512xf32> to vector<128x256xf32>
    %c0_24 = arith.constant 0 : index
    %c0_25 = arith.constant 0 : index
    %49 = vector.load %arg5[%c0_24, %c0_25] : memref<256x128xf32, #tpu.memory_space<vmem>>, vector<256x128xf32>
    %cst_26 = arith.constant dense<0.000000e+00> : vector<128x128xf32>
    %50 = tpu.matmul %48, %49, %cst_26 {dimension_numbers = #tpu.dot_dimension_numbers<[1], [0], [0], [1], [0, 0, 1, 1], [], []>} : vector<128x256xf32>, vector<256x128xf32>, vector<128x128xf32> -> vector<128x128xf32>
    %51 = vector.broadcast %38 : vector<1x128xf32> to vector<128x128xf32>
    %52 = arith.addf %50, %51 : vector<128x128xf32>
    %53 = vector.shape_cast %52 : vector<128x128xf32> to vector<8x16x128xf32>
    %c0_27 = arith.constant 0 : index
    %c0_28 = arith.constant 0 : index
    %c0_29 = arith.constant 0 : index
    %c0_30 = arith.constant 0 : index
    %c128 = arith.constant 128 : index
    %54 = vector.load %arg9[%c0_27, %c0_28, %c0_29, %c0_30, %c128] : memref<1x8x2x16x256xf32, #tpu.memory_space<vmem>>, vector<1x8x1x16x128xf32>
    %55 = vector.shape_cast %54 : vector<1x8x1x16x128xf32> to vector<8x16x128xf32>
    %56 = vector.shape_cast %53 : vector<8x16x128xf32> to vector<1x8x1x16x128xf32>
    tpu.vector_store %arg9[%c0_27, %c0_28, %c0_29, %c0_30, %c128], %56 {strides = array<i32>} : memref<1x8x2x16x256xf32, #tpu.memory_space<vmem>>, vector<1x8x1x16x128xf32>,
    %57 = vector.extract_strided_slice %37 {offsets = [0, 128], sizes = [128, 256], strides = [1, 1]} : vector<128x512xf32> to vector<128x256xf32>
    %c0_31 = arith.constant 0 : index
    %c0_32 = arith.constant 0 : index
    %58 = vector.load %arg6[%c0_31, %c0_32] : memref<256x128xf32, #tpu.memory_space<vmem>>, vector<256x128xf32>
    %cst_33 = arith.constant dense<0.000000e+00> : vector<128x128xf32>
    %59 = tpu.matmul %57, %58, %cst_33 {dimension_numbers = #tpu.dot_dimension_numbers<[1], [0], [0], [1], [0, 0, 1, 1], [], []>} : vector<128x256xf32>, vector<256x128xf32>, vector<128x128xf32> -> vector<128x128xf32>
    %60 = vector.broadcast %38 : vector<1x128xf32> to vector<128x128xf32>
    %61 = arith.addf %59, %60 : vector<128x128xf32>
    %62 = vector.shape_cast %61 : vector<128x128xf32> to vector<8x16x128xf32>
    %c0_34 = arith.constant 0 : index
    %c0_35 = arith.constant 0 : index
    %c1 = arith.constant 1 : index
    %c0_36 = arith.constant 0 : index
    %c0_37 = arith.constant 0 : index
    %63 = vector.load %arg9[%c0_34, %c0_35, %c1, %c0_36, %c0_37] : memref<1x8x2x16x256xf32, #tpu.memory_space<vmem>>, vector<1x8x1x16x128xf32>
    %64 = vector.shape_cast %63 : vector<1x8x1x16x128xf32> to vector<8x16x128xf32>
    %65 = vector.shape_cast %62 : vector<8x16x128xf32> to vector<1x8x1x16x128xf32>
    tpu.vector_store %arg9[%c0_34, %c0_35, %c1, %c0_36, %c0_37], %65 {strides = array<i32>} : memref<1x8x2x16x256xf32, #tpu.memory_space<vmem>>, vector<1x8x1x16x128xf32>,
    %c0_38 = arith.constant 0 : index
    %c0_39 = arith.constant 0 : index
    %66 = vector.load %arg7[%c0_38, %c0_39] : memref<512x128xf32, #tpu.memory_space<vmem>>, vector<512x128xf32>
    %cst_40 = arith.constant dense<0.000000e+00> : vector<128x128xf32>
    %67 = tpu.matmul %37, %66, %cst_40 {dimension_numbers = #tpu.dot_dimension_numbers<[1], [0], [0], [1], [0, 0, 1, 1], [], []>} : vector<128x512xf32>, vector<512x128xf32>, vector<128x128xf32> -> vector<128x128xf32>
    %68 = vector.broadcast %38 : vector<1x128xf32> to vector<128x128xf32>
    %69 = arith.addf %67, %68 : vector<128x128xf32>
    %70 = vector.shape_cast %69 : vector<128x128xf32> to vector<8x16x128xf32>
    %c0_41 = arith.constant 0 : index
    %c0_42 = arith.constant 0 : index
    %c1_43 = arith.constant 1 : index
    %c0_44 = arith.constant 0 : index
    %c128_45 = arith.constant 128 : index
    %71 = vector.load %arg9[%c0_41, %c0_42, %c1_43, %c0_44, %c128_45] : memref<1x8x2x16x256xf32, #tpu.memory_space<vmem>>, vector<1x8x1x16x128xf32>
    %72 = vector.shape_cast %71 : vector<1x8x1x16x128xf32> to vector<8x16x128xf32>
    %73 = vector.shape_cast %70 : vector<8x16x128xf32> to vector<1x8x1x16x128xf32>
    tpu.vector_store %arg9[%c0_41, %c0_42, %c1_43, %c0_44, %c128_45], %73 {strides = array<i32>} : memref<1x8x2x16x256xf32, #tpu.memory_space<vmem>>, vector<1x8x1x16x128xf32>,
    return
  }
  func.func @transform_0(%arg0: i32, %arg1: i32) -> (i32, i32, i32, i32) {
    %c0_i32 = arith.constant 0 : i32
    %c0_i32_0 = arith.constant 0 : i32
    %c0_i32_1 = arith.constant 0 : i32
    return %arg0, %arg1, %c0_i32, %c0_i32_0 : i32, i32, i32, i32
  }
  func.func @transform_1(%arg0: i32, %arg1: i32) -> (i32, i32, i32, i32) {
    %c1_i32 = arith.constant 1 : i32
    %0 = arith.addi %arg1, %c1_i32 : i32
    %c8_i32 = arith.constant 8 : i32
    %1 = arith.muli %0, %c8_i32 : i32
    %c15_i32 = arith.constant 15 : i32
    %2 = arith.minsi %1, %c15_i32 : i32
    %c0_i32 = arith.constant 0 : i32
    %c0_i32_0 = arith.constant 0 : i32
    %c0_i32_1 = arith.constant 0 : i32
    return %arg0, %2, %c0_i32, %c0_i32_0 : i32, i32, i32, i32
  }
  func.func @transform_2(%arg0: i32, %arg1: i32) -> (i32, i32) {
    %c0_i32 = arith.constant 0 : i32
    %c0_i32_0 = arith.constant 0 : i32
    %c0_i32_1 = arith.constant 0 : i32
    return %c0_i32, %c0_i32_0 : i32, i32
  }
  func.func @transform_3(%arg0: i32, %arg1: i32) -> (i32, i32) {
    %c0_i32 = arith.constant 0 : i32
    %c0_i32_0 = arith.constant 0 : i32
    %c0_i32_1 = arith.constant 0 : i32
    return %c0_i32, %c0_i32_0 : i32, i32
  }
  func.func @transform_4(%arg0: i32, %arg1: i32) -> (i32, i32) {
    %c0_i32 = arith.constant 0 : i32
    %c0_i32_0 = arith.constant 0 : i32
    %c0_i32_1 = arith.constant 0 : i32
    return %c0_i32, %c0_i32_0 : i32, i32
  }
  func.func @transform_5(%arg0: i32, %arg1: i32) -> (i32, i32) {
    %c0_i32 = arith.constant 0 : i32
    %c0_i32_0 = arith.constant 0 : i32
    %c0_i32_1 = arith.constant 0 : i32
    return %c0_i32, %c0_i32_0 : i32, i32
  }
  func.func @transform_6(%arg0: i32, %arg1: i32) -> (i32, i32) {
    %c0_i32 = arith.constant 0 : i32
    %c0_i32_0 = arith.constant 0 : i32
    %c0_i32_1 = arith.constant 0 : i32
    return %c0_i32, %c0_i32_0 : i32, i32
  }
  func.func @transform_7(%arg0: i32, %arg1: i32) -> (i32, i32, i32, i32, i32) {
    %c0_i32 = arith.constant 0 : i32
    %c0_i32_0 = arith.constant 0 : i32
    %c0_i32_1 = arith.constant 0 : i32
    %c0_i32_2 = arith.constant 0 : i32
    return %arg0, %arg1, %c0_i32, %c0_i32_0, %c0_i32_1 : i32, i32, i32, i32, i32
  }
}

</mosaic_0001>

<llo_original>
// kernel: tpu_custom_call.1
$region0: #{tpu_custom_call.1}
  #allocation0 [shape = 'u32[]', space=smem, size = 0x4, offset = 0x4, fixed_abs, tag = 'smem constant byte address 0x4 - core index']
  #allocation1 [shape = 'u32[144,128]{1,0:T(1,128)}', space=vmem, size = 0x12000, scoped, tag = 'internal scratch']
  %s0 = inlined_call_operand.hbm [shape: f32[2,16,16,128], index: 0, kind: input, shape index: {}]
  %s1 = inlined_call_operand.hbm [shape: f32[2,16,16,128], index: 1, kind: input, shape index: {}]
  %s2 = inlined_call_operand.hbm [shape: f32[128,128], index: 2, kind: input, shape index: {}]
  %s3 = inlined_call_operand.hbm [shape: f32[256,128], index: 3, kind: input, shape index: {}]
  %s4 = inlined_call_operand.hbm [shape: f32[256,128], index: 4, kind: input, shape index: {}]
  %s5 = inlined_call_operand.hbm [shape: f32[512,128], index: 5, kind: input, shape index: {}]
  %s6 = inlined_call_operand.vmem [shape: f32[1,128], index: 6, kind: input, shape index: {}]
  %s7 = inlined_call_operand.hbm [shape: f32[2,16,2,16,256], index: 7, kind: output, shape index: {}]
  %s8 = sld [smem:[#allocation0]]
  $region85: #{tpu_custom_call.1} parent=0
    _
  %s10 = ssub.s32 1, %s8
  %s11 = scalar_select 0, %s10, %s8
  $region1: #{tpu_custom_call.1} parent=0
    #allocation2 [shape = 'u8[131072]{0}', space=vmem, size = 0x20000, scoped, tag = 'input window, operand 0']
    #allocation3 [shape = 's32[2]{0}', space=sflag, size = 0x8, scoped, tag = 'scoped memory for tpu_custom_call.1']
    #allocation4 [shape = 's32[2]{0}', space=sflag, size = 0x8, scoped, tag = 'scoped memory for tpu_custom_call.1']
    #allocation5 [shape = 'u8[16384]{0}', space=vmem, size = 0x4000, scoped, tag = 'input window, operand 1']
    #allocation6 [shape = 's32[2]{0}', space=sflag, size = 0x8, scoped, tag = 'scoped memory for tpu_custom_call.1']
    #allocation7 [shape = 'u8[65536]{0}', space=vmem, size = 0x10000, scoped, tag = 'input window, operand 2, single buffered']
    #allocation8 [shape = 'u8[131072]{0}', space=vmem, size = 0x20000, scoped, tag = 'input window, operand 3, single buffered']
    #allocation9 [shape = 's32[1]{0}', space=sflag, size = 0x4, scoped, tag = 'scoped memory for tpu_custom_call.1']
    #allocation10 [shape = 'u8[131072]{0}', space=vmem, size = 0x20000, scoped, tag = 'input window, operand 4, single buffered']
    #allocation11 [shape = 'u8[262144]{0}', space=vmem, size = 0x40000, scoped, tag = 'input window, operand 5, single buffered']
    #allocation12 [shape = 's32[1]{0}', space=sflag, size = 0x4, scoped, tag = 'scoped memory for tpu_custom_call.1']
    #allocation13 [shape = 'u8[524288]{0}', space=vmem, size = 0x80000, scoped, tag = 'output window, operand 0']
    %12 = vsyncpa [#allocation3], 0
    %s13 = scalar_lea.sflag [#allocation3], 1
    %14 = vsyncpa %s13, 0
    %15 = vsyncpa [#allocation6], 0
    %s16 = scalar_lea.sflag [#allocation6], 1
    %17 = vsyncpa %s16, 0
    %18 = vsyncpa [#allocation9], 0
    %19 = vsyncpa [#allocation12], 0
    %20 = vsyncpa [#allocation4], 0
    %s21 = scalar_lea.sflag [#allocation4], 1
    %22 = vsyncpa %s21, 0
    loop: start=0, step=1, limit=6
    $region2: #{tpu_custom_call.1} parent=1 // loop_pre_header
      _
    $region3: #{tpu_custom_call.1} parent=1 // loop_header
      %s24 = sphi 0, %s28
      %p25 = scmp.ge.s32.totalorder %s24, 6
      %s31 = sphi 0, %s43
      %s32 = sphi 0, %s39
      %s33 = sphi 0, %s31
      %s34 = sphi 0, %s32
      %s35 = sphi 0, %s33
      %s36 = sphi 0, %s34
      %s48 = sphi 0, %s50
      %s51 = sphi 0, %s48
      %s52 = sphi 0, %s51
      %s68 = sphi 0, %s52
      %s84 = sphi 0, %s86
      %s87 = sphi 0, %s84
      %s88 = sphi 0, %s87
      %s104 = sphi 0, %s88
      %s108 = sphi 0, %s108
      %s110 = sphi 0, %s108
      %s111 = sphi 0, %s110
      %s125 = sphi 0, %s111
      %s129 = sphi 0, %s129
      %s131 = sphi 0, %s129
      %s132 = sphi 0, %s131
      %s146 = sphi 0, %s132
      %s150 = sphi 0, %s150
      %s152 = sphi 0, %s150
      %s153 = sphi 0, %s152
      %s167 = sphi 0, %s153
      %s171 = sphi 0, %s171
      %s173 = sphi 0, %s171
      %s174 = sphi 0, %s173
      %s188 = sphi 0, %s174
      %s192 = sphi 0, %s192
      %s194 = sphi 0, %s192
      %s195 = sphi 0, %s194
      %s209 = sphi 0, %s195
      %s217 = sphi 0, %s219
      %s220 = sphi 0, %s217
      %s221 = sphi 0, %s220
      %s237 = sphi 0, %s221
    $region4: #{tpu_custom_call.1} parent=1 // loop_header_branch
      %27 = sbr.rel (%p25) target = $region8
    $region5: #{tpu_custom_call.1} parent=1 // loop_body
      %s29 = ssub.s32 %s24, 1
      %s30 = ssub.s32 %s24, 2
      %s37 = sadd.s32 1, %s32
      %p38 = scmp.ge.s32.totalorder %s37, 2
      %s39 = scalar_select %p38, 0, %s37
      %s40 = sadd.s32 1, %s31
      %s41 = scalar_select %p38, %s40, %s31
      %p42 = scmp.ge.s32.totalorder %s41, 2
      %s43 = scalar_select %p42, 0, %s41
      %s44 = ssub.s32 %s31, %s43
      %s45 = ssub.s32 %s32, %s39
      %s46 = sor.u32 %s44, %s45
      %p47 = scmp.eq.s32.totalorder %s46, 0
      %s49 = sadd.s32 %s48, 1
      %s50 = scalar_select %p47, %s48, %s49
      %p53 = pneg %p47
      %p54 = scmp.eq.s32.totalorder %s24, 3
      %p55 = por %p53, %p54
      %p56 = scmp.ne.s32.totalorder %s48, %s51
      %p57 = scmp.eq.s32.totalorder %s24, 0
      %p58 = por %p56, %p57
      %p59 = scmp.ne.s32.totalorder %s48, %s51
      %p60 = scmp.eq.s32.totalorder %s29, 3
      %p61 = por %p59, %p60
      %p62 = scmp.ne.s32.totalorder %s51, %s52
      %p63 = scmp.eq.s32.totalorder %s29, 0
      %p64 = por %p62, %p63
      %p65 = scmp.ne.s32.totalorder %s51, %s52
      %p66 = scmp.eq.s32.totalorder %s30, 3
      %p67 = por %p65, %p66
      %p69 = scmp.ne.s32.totalorder %s52, %s68
      %p70 = scmp.eq.s32.totalorder %s30, 0
      %p71 = por %p69, %p70
      %s72 = sadd.s32 %s32, 1
      %s73 = smul.u32 %s72, 8
      %p74 = scmp.lt.s32.totalorder %s73, 15
      %s75 = scalar_select %p74, %s73, 15
      %s76 = sadd.s32 %s39, 1
      %s77 = smul.u32 %s76, 8
      %p78 = scmp.lt.s32.totalorder %s77, 15
      %s79 = scalar_select %p78, %s77, 15
      %s80 = ssub.s32 %s31, %s43
      %s81 = ssub.s32 %s75, %s79
      %s82 = sor.u32 %s80, %s81
      %p83 = scmp.eq.s32.totalorder %s82, 0
      %s85 = sadd.s32 %s84, 1
      %s86 = scalar_select %p83, %s84, %s85
      %p89 = pneg %p83
      %p90 = scmp.eq.s32.totalorder %s24, 3
      %p91 = por %p89, %p90
      %p92 = scmp.ne.s32.totalorder %s84, %s87
      %p93 = scmp.eq.s32.totalorder %s24, 0
      %p94 = por %p92, %p93
      %p95 = scmp.ne.s32.totalorder %s84, %s87
      %p96 = scmp.eq.s32.totalorder %s29, 3
      %p97 = por %p95, %p96
      %p98 = scmp.ne.s32.totalorder %s87, %s88
      %p99 = scmp.eq.s32.totalorder %s29, 0
      %p100 = por %p98, %p99
      %p101 = scmp.ne.s32.totalorder %s87, %s88
      %p102 = scmp.eq.s32.totalorder %s30, 3
      %p103 = por %p101, %p102
      %p105 = scmp.ne.s32.totalorder %s88, %s104
      %p106 = scmp.eq.s32.totalorder %s30, 0
      %p107 = por %p105, %p106
      %s109 = sadd.s32 %s108, 1
      %p112 = scmp.eq.s32.totalorder %s24, 3
      %p113 = scmp.ne.s32.totalorder %s108, %s110
      %p114 = scmp.eq.s32.totalorder %s24, 0
      %p115 = por %p113, %p114
      %p116 = scmp.ne.s32.totalorder %s108, %s110
      %p117 = scmp.eq.s32.totalorder %s29, 3
      %p118 = por %p116, %p117
      %p119 = scmp.ne.s32.totalorder %s110, %s111
      %p120 = scmp.eq.s32.totalorder %s29, 0
      %p121 = por %p119, %p120
      %p122 = scmp.ne.s32.totalorder %s110, %s111
      %p123 = scmp.eq.s32.totalorder %s30, 3
      %p124 = por %p122, %p123
      %p126 = scmp.ne.s32.totalorder %s111, %s125
      %p127 = scmp.eq.s32.totalorder %s30, 0
      %p128 = por %p126, %p127
      %s130 = sadd.s32 %s129, 1
      %p133 = scmp.eq.s32.totalorder %s24, 3
      %p134 = scmp.ne.s32.totalorder %s129, %s131
      %p135 = scmp.eq.s32.totalorder %s24, 0
      %p136 = por %p134, %p135
      %p137 = scmp.ne.s32.totalorder %s129, %s131
      %p138 = scmp.eq.s32.totalorder %s29, 3
      %p139 = por %p137, %p138
      %p140 = scmp.ne.s32.totalorder %s131, %s132
      %p141 = scmp.eq.s32.totalorder %s29, 0
      %p142 = por %p140, %p141
      %p143 = scmp.ne.s32.totalorder %s131, %s132
      %p144 = scmp.eq.s32.totalorder %s30, 3
      %p145 = por %p143, %p144
      %p147 = scmp.ne.s32.totalorder %s132, %s146
      %p148 = scmp.eq.s32.totalorder %s30, 0
      %p149 = por %p147, %p148
      %s151 = sadd.s32 %s150, 1
      %p154 = scmp.eq.s32.totalorder %s24, 3
      %p155 = scmp.ne.s32.totalorder %s150, %s152
      %p156 = scmp.eq.s32.totalorder %s24, 0
      %p157 = por %p155, %p156
      %p158 = scmp.ne.s32.totalorder %s150, %s152
      %p159 = scmp.eq.s32.totalorder %s29, 3
      %p160 = por %p158, %p159
      %p161 = scmp.ne.s32.totalorder %s152, %s153
      %p162 = scmp.eq.s32.totalorder %s29, 0
      %p163 = por %p161, %p162
      %p164 = scmp.ne.s32.totalorder %s152, %s153
      %p165 = scmp.eq.s32.totalorder %s30, 3
      %p166 = por %p164, %p165
      %p168 = scmp.ne.s32.totalorder %s153, %s167
      %p169 = scmp.eq.s32.totalorder %s30, 0
      %p170 = por %p168, %p169
      %s172 = sadd.s32 %s171, 1
      %p175 = scmp.eq.s32.totalorder %s24, 3
      %p176 = scmp.ne.s32.totalorder %s171, %s173
      %p177 = scmp.eq.s32.totalorder %s24, 0
      %p178 = por %p176, %p177
      %p179 = scmp.ne.s32.totalorder %s171, %s173
      %p180 = scmp.eq.s32.totalorder %s29, 3
      %p181 = por %p179, %p180
      %p182 = scmp.ne.s32.totalorder %s173, %s174
      %p183 = scmp.eq.s32.totalorder %s29, 0
      %p184 = por %p182, %p183
      %p185 = scmp.ne.s32.totalorder %s173, %s174
      %p186 = scmp.eq.s32.totalorder %s30, 3
      %p187 = por %p185, %p186
      %p189 = scmp.ne.s32.totalorder %s174, %s188
      %p190 = scmp.eq.s32.totalorder %s30, 0
      %p191 = por %p189, %p190
      %s193 = sadd.s32 %s192, 1
      %p196 = scmp.eq.s32.totalorder %s24, 3
      %p197 = scmp.ne.s32.totalorder %s192, %s194
      %p198 = scmp.eq.s32.totalorder %s24, 0
      %p199 = por %p197, %p198
      %p200 = scmp.ne.s32.totalorder %s192, %s194
      %p201 = scmp.eq.s32.totalorder %s29, 3
      %p202 = por %p200, %p201
      %p203 = scmp.ne.s32.totalorder %s194, %s195
      %p204 = scmp.eq.s32.totalorder %s29, 0
      %p205 = por %p203, %p204
      %p206 = scmp.ne.s32.totalorder %s194, %s195
      %p207 = scmp.eq.s32.totalorder %s30, 3
      %p208 = por %p206, %p207
      %p210 = scmp.ne.s32.totalorder %s195, %s209
      %p211 = scmp.eq.s32.totalorder %s30, 0
      %p212 = por %p210, %p211
      %s213 = ssub.s32 %s31, %s43
      %s214 = ssub.s32 %s32, %s39
      %s215 = sor.u32 %s213, %s214
      %p216 = scmp.eq.s32.totalorder %s215, 0
      %s218 = sadd.s32 %s217, 1
      %s219 = scalar_select %p216, %s217, %s218
      %p222 = pneg %p216
      %p223 = scmp.eq.s32.totalorder %s24, 3
      %p224 = por %p222, %p223
      %p225 = scmp.ne.s32.totalorder %s217, %s220
      %p226 = scmp.eq.s32.totalorder %s24, 0
      %p227 = por %p225, %p226
      %p228 = scmp.ne.s32.totalorder %s217, %s220
      %p229 = scmp.eq.s32.totalorder %s29, 3
      %p230 = por %p228, %p229
      %p231 = scmp.ne.s32.totalorder %s220, %s221
      %p232 = scmp.eq.s32.totalorder %s29, 0
      %p233 = por %p231, %p232
      %p234 = scmp.ne.s32.totalorder %s220, %s221
      %p235 = scmp.eq.s32.totalorder %s30, 3
      %p236 = por %p234, %p235
      %p238 = scmp.ne.s32.totalorder %s221, %s237
      %p239 = scmp.eq.s32.totalorder %s30, 0
      %p240 = por %p238, %p239
      %p241 = scmp.le.s32.totalorder 1, %s24
      %p242 = scmp.lt.s32.totalorder %s24, 5
      %p243 = pnand %p241, %p242
      %p244 = pneg %p243
      // Predicated region
      $region9: #{tpu_custom_call.1} parent=5 // pred_check
        _
      $region10: #{tpu_custom_call.1} parent=5 // pred_check_branch
        %246 = sbr.rel (%p243) target = $region12
      $region11: #{tpu_custom_call.1} parent=5 // pred_region
        %s247 = ssub.s32 %s24, 1
        // Predicated region
        $region13: #{tpu_custom_call.1} parent=11 // pred_check
          %p248 = pneg %p121
        $region14: #{tpu_custom_call.1} parent=11 // pred_check_branch
          %250 = sbr.rel (%p248) target = $region16
        $region15: #{tpu_custom_call.1} parent=11 // pred_region
          %s252 = ssub.s32 2048, 2048
          %253 = vsyncadd [#allocation6], %s252
          %s254 = sshll.u32 [#allocation7], 4
          %s255 = int_to_ptr.vmem [resolvable:$true] %s254
          %260 = dma.hbm_to_vmem [thread:$0]  %s2, 2048, %s255, [#allocation6], 128, 128, 8
        $region16: #{tpu_custom_call.1} parent=11 // pred_fallthru
          _
        // Predicated region
        $region17: #{tpu_custom_call.1} parent=11 // pred_check
          %p261 = pneg %p142
        $region18: #{tpu_custom_call.1} parent=11 // pred_check_branch
          %263 = sbr.rel (%p261) target = $region20
        $region19: #{tpu_custom_call.1} parent=11 // pred_region
          %s265 = ssub.s32 4096, 4096
          %266 = vsyncadd [#allocation9], %s265
          %s267 = sshll.u32 [#allocation8], 4
          %s268 = int_to_ptr.vmem [resolvable:$true] %s267
          %273 = dma.hbm_to_vmem [thread:$0]  %s3, 4096, %s268, [#allocation9], 128, 128, 8
        $region20: #{tpu_custom_call.1} parent=11 // pred_fallthru
          _
        // Predicated region
        $region21: #{tpu_custom_call.1} parent=11 // pred_check
          %p274 = pneg %p163
        $region22: #{tpu_custom_call.1} parent=11 // pred_check_branch
          %276 = sbr.rel (%p274) target = $region24
        $region23: #{tpu_custom_call.1} parent=11 // pred_region
          %s278 = ssub.s32 4096, 4096
          %279 = vsyncadd [#allocation9], %s278
          %s280 = sshll.u32 [#allocation10], 4
          %s281 = int_to_ptr.vmem [resolvable:$true] %s280
          %286 = dma.hbm_to_vmem [thread:$0]  %s4, 4096, %s281, [#allocation9], 128, 128, 8
        $region24: #{tpu_custom_call.1} parent=11 // pred_fallthru
          _
        // Predicated region
        $region25: #{tpu_custom_call.1} parent=11 // pred_check
          %p287 = pneg %p184
        $region26: #{tpu_custom_call.1} parent=11 // pred_check_branch
          %289 = sbr.rel (%p287) target = $region28
        $region27: #{tpu_custom_call.1} parent=11 // pred_region
          %s291 = ssub.s32 8192, 8192
          %292 = vsyncadd [#allocation12], %s291
          %s293 = sshll.u32 [#allocation11], 4
          %s294 = int_to_ptr.vmem [resolvable:$true] %s293
          %299 = dma.hbm_to_vmem [thread:$0]  %s5, 8192, %s294, [#allocation12], 128, 128, 8
        $region28: #{tpu_custom_call.1} parent=11 // pred_fallthru
          _
        // Predicated region
        $region29: #{tpu_custom_call.1} parent=11 // pred_check
          %p300 = pneg %p205
        $region30: #{tpu_custom_call.1} parent=11 // pred_check_branch
          %302 = sbr.rel (%p300) target = $region32
        $region31: #{tpu_custom_call.1} parent=11 // pred_region
          _
        $region32: #{tpu_custom_call.1} parent=11 // pred_fallthru
          _
      $region12: #{tpu_custom_call.1} parent=5 // pred_fallthru
        _
      %p303 = scmp.lt.s32.totalorder %s24, 4
      // Predicated region
      $region33: #{tpu_custom_call.1} parent=5 // pred_check
        %p304 = pneg %p303
      $region34: #{tpu_custom_call.1} parent=5 // pred_check_branch
        %306 = sbr.rel (%p304) target = $region36
      $region35: #{tpu_custom_call.1} parent=5 // pred_region
        // Predicated region
        $region37: #{tpu_custom_call.1} parent=35 // pred_check
          %p307 = pneg %p58
        $region38: #{tpu_custom_call.1} parent=35 // pred_check_branch
          %309 = sbr.rel (%p307) target = $region40
        $region39: #{tpu_custom_call.1} parent=35 // pred_region
          %s310 = sand.u32 %s48, 1
          %s311 = scalar_lea.sflag [#allocation3], %s310
          %s312 = sand.u32 %s48, 1
          %s313 = smul.addr %s312, 128
          %s314 = scalar_lea.vmem [#allocation2], %s313
          %s315 = smul.u32 8, %s32
          %s317 = ssub.s32 2048, 2048
          %318 = vsyncadd %s311, %s317
          %s319 = smul.addr %s315, 2
          %s320 = smul.addr %s31, 32
          %s321 = sadd.s32 %s319, %s320
          %s322 = smul.addr %s321, 128
          %s323 = scalar_lea.hbm %s0, %s322
          %s324 = sshll.u32 %s314, 4
          %s325 = int_to_ptr.vmem [resolvable:$true] %s324
          %330 = dma.hbm_to_vmem [thread:$0]  %s323, 2048, %s325, %s311, 128, 128, 8
        $region40: #{tpu_custom_call.1} parent=35 // pred_fallthru
          _
        // Predicated region
        $region41: #{tpu_custom_call.1} parent=35 // pred_check
          %p331 = pneg %p94
        $region42: #{tpu_custom_call.1} parent=35 // pred_check_branch
          %333 = sbr.rel (%p331) target = $region44
        $region43: #{tpu_custom_call.1} parent=35 // pred_region
          %s334 = sand.u32 %s24, 1
          %s335 = scalar_lea.sflag [#allocation6], %s334
          %s336 = sand.u32 %s84, 1
          %s337 = smul.addr %s336, 16
          %s338 = scalar_lea.vmem [#allocation5], %s337
          %s339 = sadd.s32 %s32, 1
          %s340 = smul.u32 %s339, 8
          %p341 = scmp.lt.s32.totalorder %s340, 15
          %s342 = scalar_select %p341, %s340, 15
          %s344 = ssub.s32 256, 256
          %345 = vsyncadd %s335, %s344
          %s346 = smul.addr %s342, 2
          %s347 = smul.addr %s31, 32
          %s348 = sadd.s32 %s346, %s347
          %s349 = smul.addr %s348, 128
          %s350 = scalar_lea.hbm %s1, %s349
          %s351 = sshll.u32 %s338, 4
          %s352 = int_to_ptr.vmem [resolvable:$true] %s351
          %357 = dma.hbm_to_vmem [thread:$0]  %s350, 256, %s352, %s335, 128, 128, 8
        $region44: #{tpu_custom_call.1} parent=35 // pred_fallthru
          _
      $region36: #{tpu_custom_call.1} parent=5 // pred_fallthru
        _
      %p358 = scmp.le.s32.totalorder 1, %s24
      %p359 = scmp.lt.s32.totalorder %s24, 5
      %p360 = pnand %p358, %p359
      %p361 = pneg %p360
      // Predicated region
      $region45: #{tpu_custom_call.1} parent=5 // pred_check
        _
      $region46: #{tpu_custom_call.1} parent=5 // pred_check_branch
        %363 = sbr.rel (%p360) target = $region48
      $region47: #{tpu_custom_call.1} parent=5 // pred_region
        %s364 = ssub.s32 %s24, 1
        %s365 = sand.u32 %s51, 1
        %s366 = scalar_lea.sflag [#allocation3], %s365
        %s367 = sand.u32 %s51, 1
        %s368 = smul.addr %s367, 128
        %s369 = scalar_lea.vmem [#allocation2], %s368
        // Predicated region
        $region49: #{tpu_custom_call.1} parent=47 // pred_check
          %p370 = pneg %p64
        $region50: #{tpu_custom_call.1} parent=47 // pred_check_branch
          %372 = sbr.rel (%p370) target = $region52
        $region51: #{tpu_custom_call.1} parent=47 // pred_region
          %373 = dma.done %s366, 2048
        $region52: #{tpu_custom_call.1} parent=47 // pred_fallthru
          _
        %s374 = sand.u32 %s29, 1
        %s375 = scalar_lea.sflag [#allocation6], %s374
        %s376 = sand.u32 %s87, 1
        %s377 = smul.addr %s376, 16
        %s378 = scalar_lea.vmem [#allocation5], %s377
        // Predicated region
        $region53: #{tpu_custom_call.1} parent=47 // pred_check
          %p379 = pneg %p100
        $region54: #{tpu_custom_call.1} parent=47 // pred_check_branch
          %381 = sbr.rel (%p379) target = $region56
        $region55: #{tpu_custom_call.1} parent=47 // pred_region
          %382 = dma.done %s375, 256
        $region56: #{tpu_custom_call.1} parent=47 // pred_fallthru
          _
        // Predicated region
        $region57: #{tpu_custom_call.1} parent=47 // pred_check
          %p383 = pneg %p121
        $region58: #{tpu_custom_call.1} parent=47 // pred_check_branch
          %385 = sbr.rel (%p383) target = $region60
        $region59: #{tpu_custom_call.1} parent=47 // pred_region
          %386 = dma.done [#allocation6], 2048
        $region60: #{tpu_custom_call.1} parent=47 // pred_fallthru
          _
        // Predicated region
        $region61: #{tpu_custom_call.1} parent=47 // pred_check
          %p387 = pneg %p142
        $region62: #{tpu_custom_call.1} parent=47 // pred_check_branch
          %389 = sbr.rel (%p387) target = $region64
        $region63: #{tpu_custom_call.1} parent=47 // pred_region
          %390 = dma.done [#allocation9], 4096
        $region64: #{tpu_custom_call.1} parent=47 // pred_fallthru
          _
        // Predicated region
        $region65: #{tpu_custom_call.1} parent=47 // pred_check
          %p391 = pneg %p163
        $region66: #{tpu_custom_call.1} parent=47 // pred_check_branch
          %393 = sbr.rel (%p391) target = $region68
        $region67: #{tpu_custom_call.1} parent=47 // pred_region
          %394 = dma.done [#allocation9], 4096
        $region68: #{tpu_custom_call.1} parent=47 // pred_fallthru
          _
        // Predicated region
        $region69: #{tpu_custom_call.1} parent=47 // pred_check
          %p395 = pneg %p184
        $region70: #{tpu_custom_call.1} parent=47 // pred_check_branch
          %397 = sbr.rel (%p395) target = $region72
        $region71: #{tpu_custom_call.1} parent=47 // pred_region
          %398 = dma.done [#allocation12], 8192
        $region72: #{tpu_custom_call.1} parent=47 // pred_fallthru
          _
        %s399 = sand.u32 %s51, 1
        %s400 = scalar_lea.sflag [#allocation3], %s399
        %s401 = sand.u32 %s51, 1
        %s402 = smul.addr %s401, 128
        %s403 = scalar_lea.vmem [#allocation2], %s402
        %p404 = pneg %p64
        %p405 = pneg %p61
        %s406 = sand.u32 %s29, 1
        %s407 = scalar_lea.sflag [#allocation6], %s406
        %s408 = sand.u32 %s87, 1
        %s409 = smul.addr %s408, 16
        %s410 = scalar_lea.vmem [#allocation5], %s409
        %p411 = pneg %p100
        %p412 = pneg %p97
        %p413 = pneg %p121
        %p414 = pneg %p118
        %p415 = pneg %p142
        %p416 = pneg %p139
        %p417 = pneg %p163
        %p418 = pneg %p160
        %p419 = pneg %p184
        %p420 = pneg %p181
        %p421 = pneg %p205
        %p422 = pneg %p202
        %p423 = pneg %p233
        %p424 = pneg %p230
        %s425 = sand.u32 %s220, 1
        %s426 = scalar_lea.sflag [#allocation4], %s425
        %s427 = sand.u32 %s220, 1
        %s428 = smul.addr %s427, 512
        %s429 = scalar_lea.vmem [#allocation13], %s428
        %s430 = smul.u32 8, %s34
        %s431 = sadd.s32 %s34, 1
        %s432 = smul.u32 %s431, 8
        %p433 = scmp.lt.s32.totalorder %s432, 15
        %s434 = scalar_select %p433, %s432, 15
        %s435 = smul.u32 8, %s34
        %v436 = vld [vmem:[%s369] sm:$0xff]
        %v437 = vld [vmem:[%s369 + $0x8] sm:$0xff]
        %v438 = vld [vmem:[%s369 + $0x10] sm:$0xff]
        %v439 = vld [vmem:[%s369 + $0x18] sm:$0xff]
        %v440 = vld [vmem:[%s369 + $0x20] sm:$0xff]
        %v441 = vld [vmem:[%s369 + $0x28] sm:$0xff]
        %v442 = vld [vmem:[%s369 + $0x30] sm:$0xff]
        %v443 = vld [vmem:[%s369 + $0x38] sm:$0xff]
        %v444 = vld [vmem:[%s369 + $0x40] sm:$0xff]
        %v445 = vld [vmem:[%s369 + $0x48] sm:$0xff]
        %v446 = vld [vmem:[%s369 + $0x50] sm:$0xff]
        %v447 = vld [vmem:[%s369 + $0x58] sm:$0xff]
        %v448 = vld [vmem:[%s369 + $0x60] sm:$0xff]
        %v449 = vld [vmem:[%s369 + $0x68] sm:$0xff]
        %v450 = vld [vmem:[%s369 + $0x70] sm:$0xff]
        %v451 = vld [vmem:[%s369 + $0x78] sm:$0xff]
        %v452 = vld [vmem:[%s378] sm:$0xff]
        %v453 = vld [vmem:[%s378 + $0x8] sm:$0xff]
        %p454 = scmp.eq.s32.totalorder %s34, 1
        %s455 = scalar_select %p454, 0.0, 1.0
        %v456 = vstv %s455
        %v457 = vmul.f32 %v452, %v456
        %v458 = vmul.f32 %v453, %v456
        %v459 = vlaneseq
        %v460 = vshrl.u32 %v459, 7
        %v461 = vadd.s32 %v460, 8
        %v462 = vadd.s32 %v460, 16
        %v463 = vadd.s32 %v460, 24
        %v464 = vadd.s32 %v460, 32
        %v465 = vadd.s32 %v460, 40
        %v466 = vadd.s32 %v460, 48
        %v467 = vadd.s32 %v460, 56
        %v468 = vadd.s32 %v460, 64
        %v469 = vadd.s32 %v460, 72
        %v470 = vadd.s32 %v460, 80
        %v471 = vadd.s32 %v460, 88
        %v472 = vadd.s32 %v460, 96
        %v473 = vadd.s32 %v460, 104
        %v474 = vadd.s32 %v460, 112
        %v475 = vadd.s32 %v460, 120
        %vm476 = vcmp.lt.s32.totalorder %v460, 0
        %v477 = vsub.s32 0, %v460
        %v478 = vsel %vm476, %v477, %v460
        %v479 = vshrl.u32 %v478, 4
        %v480 = vand.u32 %v478, 15
        %v481 = vsub.s32 0, %v480
        %v482 = vsel %vm476, %v481, %v480
        %vm483 = vcmp.lt.s32.totalorder %v461, 0
        %v484 = vsub.s32 0, %v461
        %v485 = vsel %vm483, %v484, %v461
        %v486 = vshrl.u32 %v485, 4
        %v487 = vand.u32 %v485, 15
        %v488 = vsub.s32 0, %v487
        %v489 = vsel %vm483, %v488, %v487
        %vm490 = vcmp.lt.s32.totalorder %v462, 0
        %v491 = vsub.s32 0, %v462
        %v492 = vsel %vm490, %v491, %v462
        %v493 = vshrl.u32 %v492, 4
        %v494 = vand.u32 %v492, 15
        %v495 = vsub.s32 0, %v494
        %v496 = vsel %vm490, %v495, %v494
        %vm497 = vcmp.lt.s32.totalorder %v463, 0
        %v498 = vsub.s32 0, %v463
        %v499 = vsel %vm497, %v498, %v463
        %v500 = vshrl.u32 %v499, 4
        %v501 = vand.u32 %v499, 15
        %v502 = vsub.s32 0, %v501
        %v503 = vsel %vm497, %v502, %v501
        %vm504 = vcmp.lt.s32.totalorder %v464, 0
        %v505 = vsub.s32 0, %v464
        %v506 = vsel %vm504, %v505, %v464
        %v507 = vshrl.u32 %v506, 4
        %v508 = vand.u32 %v506, 15
        %v509 = vsub.s32 0, %v508
        %v510 = vsel %vm504, %v509, %v508
        %vm511 = vcmp.lt.s32.totalorder %v465, 0
        %v512 = vsub.s32 0, %v465
        %v513 = vsel %vm511, %v512, %v465
        %v514 = vshrl.u32 %v513, 4
        %v515 = vand.u32 %v513, 15
        %v516 = vsub.s32 0, %v515
        %v517 = vsel %vm511, %v516, %v515
        %vm518 = vcmp.lt.s32.totalorder %v466, 0
        %v519 = vsub.s32 0, %v466
        %v520 = vsel %vm518, %v519, %v466
        %v521 = vshrl.u32 %v520, 4
        %v522 = vand.u32 %v520, 15
        %v523 = vsub.s32 0, %v522
        %v524 = vsel %vm518, %v523, %v522
        %vm525 = vcmp.lt.s32.totalorder %v467, 0
        %v526 = vsub.s32 0, %v467
        %v527 = vsel %vm525, %v526, %v467
        %v528 = vshrl.u32 %v527, 4
        %v529 = vand.u32 %v527, 15
        %v530 = vsub.s32 0, %v529
        %v531 = vsel %vm525, %v530, %v529
        %vm532 = vcmp.lt.s32.totalorder %v468, 0
        %v533 = vsub.s32 0, %v468
        %v534 = vsel %vm532, %v533, %v468
        %v535 = vshrl.u32 %v534, 4
        %v536 = vand.u32 %v534, 15
        %v537 = vsub.s32 0, %v536
        %v538 = vsel %vm532, %v537, %v536
        %vm539 = vcmp.lt.s32.totalorder %v469, 0
        %v540 = vsub.s32 0, %v469
        %v541 = vsel %vm539, %v540, %v469
        %v542 = vshrl.u32 %v541, 4
        %v543 = vand.u32 %v541, 15
        %v544 = vsub.s32 0, %v543
        %v545 = vsel %vm539, %v544, %v543
        %vm546 = vcmp.lt.s32.totalorder %v470, 0
        %v547 = vsub.s32 0, %v470
        %v548 = vsel %vm546, %v547, %v470
        %v549 = vshrl.u32 %v548, 4
        %v550 = vand.u32 %v548, 15
        %v551 = vsub.s32 0, %v550
        %v552 = vsel %vm546, %v551, %v550
        %vm553 = vcmp.lt.s32.totalorder %v471, 0
        %v554 = vsub.s32 0, %v471
        %v555 = vsel %vm553, %v554, %v471
        %v556 = vshrl.u32 %v555, 4
        %v557 = vand.u32 %v555, 15
        %v558 = vsub.s32 0, %v557
        %v559 = vsel %vm553, %v558, %v557
        %vm560 = vcmp.lt.s32.totalorder %v472, 0
        %v561 = vsub.s32 0, %v472
        %v562 = vsel %vm560, %v561, %v472
        %v563 = vshrl.u32 %v562, 4
        %v564 = vand.u32 %v562, 15
        %v565 = vsub.s32 0, %v564
        %v566 = vsel %vm560, %v565, %v564
        %vm567 = vcmp.lt.s32.totalorder %v473, 0
        %v568 = vsub.s32 0, %v473
        %v569 = vsel %vm567, %v568, %v473
        %v570 = vshrl.u32 %v569, 4
        %v571 = vand.u32 %v569, 15
        %v572 = vsub.s32 0, %v571
        %v573 = vsel %vm567, %v572, %v571
        %vm574 = vcmp.lt.s32.totalorder %v474, 0
        %v575 = vsub.s32 0, %v474
        %v576 = vsel %vm574, %v575, %v474
        %v577 = vshrl.u32 %v576, 4
        %v578 = vand.u32 %v576, 15
        %v579 = vsub.s32 0, %v578
        %v580 = vsel %vm574, %v579, %v578
        %vm581 = vcmp.lt.s32.totalorder %v475, 0
        %v582 = vsub.s32 0, %v475
        %v583 = vsel %vm581, %v582, %v475
        %v584 = vshrl.u32 %v583, 4
        %v585 = vand.u32 %v583, 15
        %v586 = vsub.s32 0, %v585
        %v587 = vsel %vm581, %v586, %v585
        %vm588 = vcmp.ne.s32.totalorder %v482, 0
        %vm589 = vcmp.ne.s32.totalorder %v489, 0
        %vm590 = vcmp.ne.s32.totalorder %v496, 0
        %vm591 = vcmp.ne.s32.totalorder %v503, 0
        %vm592 = vcmp.ne.s32.totalorder %v510, 0
        %vm593 = vcmp.ne.s32.totalorder %v517, 0
        %vm594 = vcmp.ne.s32.totalorder %v524, 0
        %vm595 = vcmp.ne.s32.totalorder %v531, 0
        %vm596 = vcmp.ne.s32.totalorder %v538, 0
        %vm597 = vcmp.ne.s32.totalorder %v545, 0
        %vm598 = vcmp.ne.s32.totalorder %v552, 0
        %vm599 = vcmp.ne.s32.totalorder %v559, 0
        %vm600 = vcmp.ne.s32.totalorder %v566, 0
        %vm601 = vcmp.ne.s32.totalorder %v573, 0
        %vm602 = vcmp.ne.s32.totalorder %v580, 0
        %vm603 = vcmp.ne.s32.totalorder %v587, 0
        %vm604 = vcmp.lt.s32.totalorder %v482, 0
        %vm605 = vcmp.lt.s32.totalorder %v489, 0
        %vm606 = vcmp.lt.s32.totalorder %v496, 0
        %vm607 = vcmp.lt.s32.totalorder %v503, 0
        %vm608 = vcmp.lt.s32.totalorder %v510, 0
        %vm609 = vcmp.lt.s32.totalorder %v517, 0
        %vm610 = vcmp.lt.s32.totalorder %v524, 0
        %vm611 = vcmp.lt.s32.totalorder %v531, 0
        %vm612 = vcmp.lt.s32.totalorder %v538, 0
        %vm613 = vcmp.lt.s32.totalorder %v545, 0
        %vm614 = vcmp.lt.s32.totalorder %v552, 0
        %vm615 = vcmp.lt.s32.totalorder %v559, 0
        %vm616 = vcmp.lt.s32.totalorder %v566, 0
        %vm617 = vcmp.lt.s32.totalorder %v573, 0
        %vm618 = vcmp.lt.s32.totalorder %v580, 0
        %vm619 = vcmp.lt.s32.totalorder %v587, 0
        %vm620 = vmand %vm604, %vm588
        %vm621 = vmand %vm605, %vm589
        %vm622 = vmand %vm606, %vm590
        %vm623 = vmand %vm607, %vm591
        %vm624 = vmand %vm608, %vm592
        %vm625 = vmand %vm609, %vm593
        %vm626 = vmand %vm610, %vm594
        %vm627 = vmand %vm611, %vm595
        %vm628 = vmand %vm612, %vm596
        %vm629 = vmand %vm613, %vm597
        %vm630 = vmand %vm614, %vm598
        %vm631 = vmand %vm615, %vm599
        %vm632 = vmand %vm616, %vm600
        %vm633 = vmand %vm617, %vm601
        %vm634 = vmand %vm618, %vm602
        %vm635 = vmand %vm619, %vm603
        %v636 = vadd.s32 %v482, 16
        %v637 = vadd.s32 %v489, 16
        %v638 = vadd.s32 %v496, 16
        %v639 = vadd.s32 %v503, 16
        %v640 = vadd.s32 %v510, 16
        %v641 = vadd.s32 %v517, 16
        %v642 = vadd.s32 %v524, 16
        %v643 = vadd.s32 %v531, 16
        %v644 = vadd.s32 %v538, 16
        %v645 = vadd.s32 %v545, 16
        %v646 = vadd.s32 %v552, 16
        %v647 = vadd.s32 %v559, 16
        %v648 = vadd.s32 %v566, 16
        %v649 = vadd.s32 %v573, 16
        %v650 = vadd.s32 %v580, 16
        %v651 = vadd.s32 %v587, 16
        %v652 = vsel %vm620, %v636, %v482
        %v653 = vsel %vm621, %v637, %v489
        %v654 = vsel %vm622, %v638, %v496
        %v655 = vsel %vm623, %v639, %v503
        %v656 = vsel %vm624, %v640, %v510
        %v657 = vsel %vm625, %v641, %v517
        %v658 = vsel %vm626, %v642, %v524
        %v659 = vsel %vm627, %v643, %v531
        %v660 = vsel %vm628, %v644, %v538
        %v661 = vsel %vm629, %v645, %v545
        %v662 = vsel %vm630, %v646, %v552
        %v663 = vsel %vm631, %v647, %v559
        %v664 = vsel %vm632, %v648, %v566
        %v665 = vsel %vm633, %v649, %v573
        %v666 = vsel %vm634, %v650, %v580
        %v667 = vsel %vm635, %v651, %v587
        %vm668 = vcmp.lt.s32.totalorder %v652, 15
        %vm669 = vcmp.lt.s32.totalorder %v653, 15
        %vm670 = vcmp.lt.s32.totalorder %v654, 15
        %vm671 = vcmp.lt.s32.totalorder %v655, 15
        %vm672 = vcmp.lt.s32.totalorder %v656, 15
        %vm673 = vcmp.lt.s32.totalorder %v657, 15
        %vm674 = vcmp.lt.s32.totalorder %v658, 15
        %vm675 = vcmp.lt.s32.totalorder %v659, 15
        %vm676 = vcmp.lt.s32.totalorder %v660, 15
        %vm677 = vcmp.lt.s32.totalorder %v661, 15
        %vm678 = vcmp.lt.s32.totalorder %v662, 15
        %vm679 = vcmp.lt.s32.totalorder %v663, 15
        %vm680 = vcmp.lt.s32.totalorder %v664, 15
        %vm681 = vcmp.lt.s32.totalorder %v665, 15
        %vm682 = vcmp.lt.s32.totalorder %v666, 15
        %vm683 = vcmp.lt.s32.totalorder %v667, 15
        %vm701 = vcmask 1046528
        %v702 = vrot.slane %v436, 1
        %v703 = vrot.slane %v437, 1
        %v704 = vsel %vm701, %v702, %v703
        %v705 = vrot.slane %v438, 1
        %v706 = vsel %vm701, %v703, %v705
        %v707 = vrot.slane %v439, 1
        %v708 = vsel %vm701, %v705, %v707
        %v709 = vrot.slane %v440, 1
        %v710 = vsel %vm701, %v707, %v709
        %v711 = vrot.slane %v441, 1
        %v712 = vsel %vm701, %v709, %v711
        %v713 = vrot.slane %v442, 1
        %v714 = vsel %vm701, %v711, %v713
        %v715 = vrot.slane %v443, 1
        %v716 = vsel %vm701, %v713, %v715
        %v717 = vrot.slane %v444, 1
        %v718 = vsel %vm701, %v715, %v717
        %v719 = vrot.slane %v445, 1
        %v720 = vsel %vm701, %v717, %v719
        %v721 = vrot.slane %v446, 1
        %v722 = vsel %vm701, %v719, %v721
        %v723 = vrot.slane %v447, 1
        %v724 = vsel %vm701, %v721, %v723
        %v725 = vrot.slane %v448, 1
        %v726 = vsel %vm701, %v723, %v725
        %v727 = vrot.slane %v449, 1
        %v728 = vsel %vm701, %v725, %v727
        %v729 = vrot.slane %v450, 1
        %v730 = vsel %vm701, %v727, %v729
        %v731 = vrot.slane %v451, 1
        %v732 = vsel %vm701, %v729, %v731
        %v733 = vrot.slane %v457, 1
        %v734 = vsel %vm701, %v731, %v733
        %v751 = vsel %vm668, %v704, 0.0
        %v752 = vsel %vm669, %v706, 0.0
        %v753 = vsel %vm670, %v708, 0.0
        %v754 = vsel %vm671, %v710, 0.0
        %v755 = vsel %vm672, %v712, 0.0
        %v756 = vsel %vm673, %v714, 0.0
        %v757 = vsel %vm674, %v716, 0.0
        %v758 = vsel %vm675, %v718, 0.0
        %v759 = vsel %vm676, %v720, 0.0
        %v760 = vsel %vm677, %v722, 0.0
        %v761 = vsel %vm678, %v724, 0.0
        %v762 = vsel %vm679, %v726, 0.0
        %v763 = vsel %vm680, %v728, 0.0
        %v764 = vsel %vm681, %v730, 0.0
        %v765 = vsel %vm682, %v732, 0.0
        %v766 = vsel %vm683, %v734, 0.0
        %v769 = vrot.slane %v458, 1
        %v770 = vsel %vm701, %v733, %v769
        %v771 = vrot.slane 0.0, 1
        %v772 = vsel %vm701, %v769, %v771
        %v775 = vsel %vm668, %v708, 0.0
        %v776 = vsel %vm669, %v710, 0.0
        %v777 = vsel %vm670, %v712, 0.0
        %v778 = vsel %vm671, %v714, 0.0
        %v779 = vsel %vm672, %v716, 0.0
        %v780 = vsel %vm673, %v718, 0.0
        %v781 = vsel %vm674, %v720, 0.0
        %v782 = vsel %vm675, %v722, 0.0
        %v783 = vsel %vm676, %v724, 0.0
        %v784 = vsel %vm677, %v726, 0.0
        %v785 = vsel %vm678, %v728, 0.0
        %v786 = vsel %vm679, %v730, 0.0
        %v787 = vsel %vm680, %v732, 0.0
        %v788 = vsel %vm681, %v734, 0.0
        %v789 = vsel %vm682, %v770, 0.0
        %v790 = vsel %vm683, %v772, 0.0
        %v791 = vld [vmem:[%s6] sm:$0x1]
        %v792 = vld [vmem:[#allocation7] sm:$0xff]
        %v793 = vld [vmem:[#allocation7 + $0x8] sm:$0xff]
        %v794 = vld [vmem:[#allocation7 + $0x10] sm:$0xff]
        %v795 = vld [vmem:[#allocation7 + $0x18] sm:$0xff]
        %v796 = vld [vmem:[#allocation7 + $0x20] sm:$0xff]
        %v797 = vld [vmem:[#allocation7 + $0x28] sm:$0xff]
        %v798 = vld [vmem:[#allocation7 + $0x30] sm:$0xff]
        %v799 = vld [vmem:[#allocation7 + $0x38] sm:$0xff]
        %v800 = vld [vmem:[#allocation7 + $0x40] sm:$0xff]
        %v801 = vld [vmem:[#allocation7 + $0x48] sm:$0xff]
        %v802 = vld [vmem:[#allocation7 + $0x50] sm:$0xff]
        %v803 = vld [vmem:[#allocation7 + $0x58] sm:$0xff]
        %v804 = vld [vmem:[#allocation7 + $0x60] sm:$0xff]
        %v805 = vld [vmem:[#allocation7 + $0x68] sm:$0xff]
        %v806 = vld [vmem:[#allocation7 + $0x70] sm:$0xff]
        %v807 = vld [vmem:[#allocation7 + $0x78] sm:$0xff]
        %v809 = vlaneseq
        %v810 = vshrl.u32 %v809, 7
        %v811 = vsub.s32 0, %v810
        %v812 = vrot.slane %v791, %v811
        %814 = vmatprep.subr.mxu0 0.0
        %815 = vmatpush1.msra.mxu0 %v807
        %816 = vmatprep.subr.mxu0 0.0
        %817 = vmatpush1.msra.mxu0 %v806
        %818 = vmatprep.subr.mxu0 0.0
        %819 = vmatpush1.msra.mxu0 %v805
        %820 = vmatprep.subr.mxu0 0.0
        %821 = vmatpush1.msra.mxu0 %v804
        %822 = vmatprep.subr.mxu0 0.0
        %823 = vmatpush1.msra.mxu0 %v803
        %824 = vmatprep.subr.mxu0 0.0
        %825 = vmatpush1.msra.mxu0 %v802
        %826 = vmatprep.subr.mxu0 0.0
        %827 = vmatpush1.msra.mxu0 %v801
        %828 = vmatprep.subr.mxu0 0.0
        %829 = vmatpush1.msra.mxu0 %v800
        %830 = vmatprep.subr.mxu0 0.0
        %831 = vmatpush1.msra.mxu0 %v799
        %832 = vmatprep.subr.mxu0 0.0
        %833 = vmatpush1.msra.mxu0 %v798
        %834 = vmatprep.subr.mxu0 0.0
        %835 = vmatpush1.msra.mxu0 %v797
        %836 = vmatprep.subr.mxu0 0.0
        %837 = vmatpush1.msra.mxu0 %v796
        %838 = vmatprep.subr.mxu0 0.0
        %839 = vmatpush1.msra.mxu0 %v795
        %840 = vmatprep.subr.mxu0 0.0
        %841 = vmatpush1.msra.mxu0 %v794
        %842 = vmatprep.subr.mxu0 0.0
        %843 = vmatpush1.msra.mxu0 %v793
        %844 = vmatprep.subr.mxu0 0.0
        %845 = vmatpush1.msra.mxu0 %v792
        %846 = vmatprep.subr.mxu0 0.0
        %847 = vmatpush2.msra.mxu0 0.0
        %848 = vmatprep.subr.mxu0 0.0
        %849 = vmatpush2.msra.mxu0 0.0
        %850 = vmatprep.subr.mxu0 0.0
        %851 = vmatpush2.msra.mxu0 0.0
        %852 = vmatprep.subr.mxu0 0.0
        %853 = vmatpush2.msra.mxu0 0.0
        %854 = vmatprep.subr.mxu0 0.0
        %855 = vmatpush2.msra.mxu0 0.0
        %856 = vmatprep.subr.mxu0 0.0
        %857 = vmatpush2.msra.mxu0 0.0
        %858 = vmatprep.subr.mxu0 0.0
        %859 = vmatpush2.msra.mxu0 0.0
        %860 = vmatprep.subr.mxu0 0.0
        %861 = vmatpush2.msra.mxu0 0.0
        %862 = vmatprep.subr.mxu0 0.0
        %863 = vmatpush2.msra.mxu0 0.0
        %864 = vmatprep.subr.mxu0 0.0
        %865 = vmatpush2.msra.mxu0 0.0
        %866 = vmatprep.subr.mxu0 0.0
        %867 = vmatpush2.msra.mxu0 0.0
        %868 = vmatprep.subr.mxu0 0.0
        %869 = vmatpush2.msra.mxu0 0.0
        %870 = vmatprep.subr.mxu0 0.0
        %871 = vmatpush2.msra.mxu0 0.0
        %872 = vmatprep.subr.mxu0 0.0
        %873 = vmatpush2.msra.mxu0 0.0
        %874 = vmatprep.subr.mxu0 0.0
        %875 = vmatpush2.msra.mxu0 0.0
        %876 = vmatprep.subr.mxu0 0.0
        %877 = vmatpush2.msra.mxu0 0.0
        %878 = vmatprep.mubr.f32.mxu0 0.0
        %879 = vmatmul.mubr.f32.gmra.mxu0 %v436
        %v880 = vpop.f32.mrf.mxu0
        %v881 = vadd.f32 %v812, %v880
        %v882 = vpop.f32.mrf.mxu0
        %883 = vmatprep.mubr.f32.mxu0 0.0
        %884 = vmatmul.mubr.f32.gmra.mxu0 %v437
        %v885 = vpop.f32.mrf.mxu0
        %v886 = vadd.f32 %v812, %v885
        %v887 = vpop.f32.mrf.mxu0
        %888 = vmatprep.mubr.f32.mxu0 0.0
        %889 = vmatmul.mubr.f32.gmra.mxu0 %v438
        %v890 = vpop.f32.mrf.mxu0
        %v891 = vadd.f32 %v812, %v890
        %v892 = vpop.f32.mrf.mxu0
        %893 = vmatprep.mubr.f32.mxu0 0.0
        %894 = vmatmul.mubr.f32.gmra.mxu0 %v439
        %v895 = vpop.f32.mrf.mxu0
        %v896 = vadd.f32 %v812, %v895
        %v897 = vpop.f32.mrf.mxu0
        %898 = vmatprep.mubr.f32.mxu0 0.0
        %899 = vmatmul.mubr.f32.gmra.mxu0 %v440
        %v900 = vpop.f32.mrf.mxu0
        %v901 = vadd.f32 %v812, %v900
        %v902 = vpop.f32.mrf.mxu0
        %903 = vmatprep.mubr.f32.mxu0 0.0
        %904 = vmatmul.mubr.f32.gmra.mxu0 %v441
        %v905 = vpop.f32.mrf.mxu0
        %v906 = vadd.f32 %v812, %v905
        %v907 = vpop.f32.mrf.mxu0
        %908 = vmatprep.mubr.f32.mxu0 0.0
        %909 = vmatmul.mubr.f32.gmra.mxu0 %v442
        %v910 = vpop.f32.mrf.mxu0
        %v911 = vadd.f32 %v812, %v910
        %v912 = vpop.f32.mrf.mxu0
        %913 = vmatprep.mubr.f32.mxu0 0.0
        %914 = vmatmul.mubr.f32.gmra.mxu0 %v443
        %v915 = vpop.f32.mrf.mxu0
        %v916 = vadd.f32 %v812, %v915
        %v917 = vpop.f32.mrf.mxu0
        %918 = vmatprep.mubr.f32.mxu0 0.0
        %919 = vmatmul.mubr.f32.gmra.mxu0 %v444
        %v920 = vpop.f32.mrf.mxu0
        %v921 = vadd.f32 %v812, %v920
        %v922 = vpop.f32.mrf.mxu0
        %923 = vmatprep.mubr.f32.mxu0 0.0
        %924 = vmatmul.mubr.f32.gmra.mxu0 %v445
        %v925 = vpop.f32.mrf.mxu0
        %v926 = vadd.f32 %v812, %v925
        %v927 = vpop.f32.mrf.mxu0
        %928 = vmatprep.mubr.f32.mxu0 0.0
        %929 = vmatmul.mubr.f32.gmra.mxu0 %v446
        %v930 = vpop.f32.mrf.mxu0
        %v931 = vadd.f32 %v812, %v930
        %v932 = vpop.f32.mrf.mxu0
        %933 = vmatprep.mubr.f32.mxu0 0.0
        %934 = vmatmul.mubr.f32.gmra.mxu0 %v447
        %v935 = vpop.f32.mrf.mxu0
        %v936 = vadd.f32 %v812, %v935
        %v937 = vpop.f32.mrf.mxu0
        %938 = vmatprep.mubr.f32.mxu0 0.0
        %939 = vmatmul.mubr.f32.gmra.mxu0 %v448
        %v940 = vpop.f32.mrf.mxu0
        %v941 = vadd.f32 %v812, %v940
        %v942 = vpop.f32.mrf.mxu0
        %943 = vmatprep.mubr.f32.mxu0 0.0
        %944 = vmatmul.mubr.f32.gmra.mxu0 %v449
        %v945 = vpop.f32.mrf.mxu0
        %v946 = vadd.f32 %v812, %v945
        %v947 = vpop.f32.mrf.mxu0
        %948 = vmatprep.mubr.f32.mxu0 0.0
        %949 = vmatmul.mubr.f32.gmra.mxu0 %v450
        %v950 = vpop.f32.mrf.mxu0
        %v951 = vadd.f32 %v812, %v950
        %v952 = vpop.f32.mrf.mxu0
        %953 = vmatprep.mubr.f32.mxu0 0.0
        %954 = vmatmul.mubr.f32.gmra.mxu0 %v451
        %v955 = vpop.f32.mrf.mxu0
        %v956 = vadd.f32 %v812, %v955
        %v957 = vpop.f32.mrf.mxu0
        %958 = vdwg.mxu0
        %959 = vst [vmem:[%s429] sm:$0xff] %v881
        %960 = vst [vmem:[%s429 + $0x10] sm:$0xff] %v886
        %961 = vst [vmem:[%s429 + $0x40] sm:$0xff] %v891
        %962 = vst [vmem:[%s429 + $0x50] sm:$0xff] %v896
        %963 = vst [vmem:[%s429 + $0x80] sm:$0xff] %v901
        %964 = vst [vmem:[%s429 + $0x90] sm:$0xff] %v906
        %965 = vst [vmem:[%s429 + $0xc0] sm:$0xff] %v911
        %966 = vst [vmem:[%s429 + $0xd0] sm:$0xff] %v916
        %967 = vst [vmem:[%s429 + $0x100] sm:$0xff] %v921
        %968 = vst [vmem:[%s429 + $0x110] sm:$0xff] %v926
        %969 = vst [vmem:[%s429 + $0x140] sm:$0xff] %v931
        %970 = vst [vmem:[%s429 + $0x150] sm:$0xff] %v936
        %971 = vst [vmem:[%s429 + $0x180] sm:$0xff] %v941
        %972 = vst [vmem:[%s429 + $0x190] sm:$0xff] %v946
        %973 = vst [vmem:[%s429 + $0x1c0] sm:$0xff] %v951
        %974 = vst [vmem:[%s429 + $0x1d0] sm:$0xff] %v956
        %v975 = vld [vmem:[#allocation8] sm:$0xff]
        %v976 = vld [vmem:[#allocation8 + $0x8] sm:$0xff]
        %v977 = vld [vmem:[#allocation8 + $0x10] sm:$0xff]
        %v978 = vld [vmem:[#allocation8 + $0x18] sm:$0xff]
        %v979 = vld [vmem:[#allocation8 + $0x20] sm:$0xff]
        %v980 = vld [vmem:[#allocation8 + $0x28] sm:$0xff]
        %v981 = vld [vmem:[#allocation8 + $0x30] sm:$0xff]
        %v982 = vld [vmem:[#allocation8 + $0x38] sm:$0xff]
        %v983 = vld [vmem:[#allocation8 + $0x40] sm:$0xff]
        %v984 = vld [vmem:[#allocation8 + $0x48] sm:$0xff]
        %v985 = vld [vmem:[#allocation8 + $0x50] sm:$0xff]
        %v986 = vld [vmem:[#allocation8 + $0x58] sm:$0xff]
        %v987 = vld [vmem:[#allocation8 + $0x60] sm:$0xff]
        %v988 = vld [vmem:[#allocation8 + $0x68] sm:$0xff]
        %v989 = vld [vmem:[#allocation8 + $0x70] sm:$0xff]
        %v990 = vld [vmem:[#allocation8 + $0x78] sm:$0xff]
        %v991 = vld [vmem:[#allocation8 + $0x80] sm:$0xff]
        %v992 = vld [vmem:[#allocation8 + $0x88] sm:$0xff]
        %v993 = vld [vmem:[#allocation8 + $0x90] sm:$0xff]
        %v994 = vld [vmem:[#allocation8 + $0x98] sm:$0xff]
        %v995 = vld [vmem:[#allocation8 + $0xa0] sm:$0xff]
        %v996 = vld [vmem:[#allocation8 + $0xa8] sm:$0xff]
        %v997 = vld [vmem:[#allocation8 + $0xb0] sm:$0xff]
        %v998 = vld [vmem:[#allocation8 + $0xb8] sm:$0xff]
        %v999 = vld [vmem:[#allocation8 + $0xc0] sm:$0xff]
        %v1000 = vld [vmem:[#allocation8 + $0xc8] sm:$0xff]
        %v1001 = vld [vmem:[#allocation8 + $0xd0] sm:$0xff]
        %v1002 = vld [vmem:[#allocation8 + $0xd8] sm:$0xff]
        %v1003 = vld [vmem:[#allocation8 + $0xe0] sm:$0xff]
        %v1004 = vld [vmem:[#allocation8 + $0xe8] sm:$0xff]
        %v1005 = vld [vmem:[#allocation8 + $0xf0] sm:$0xff]
        %v1006 = vld [vmem:[#allocation8 + $0xf8] sm:$0xff]
        %1007 = vmatprep.subr.mxu0 0.0
        %1008 = vmatpush1.msra.mxu0 %v990
        %1009 = vmatprep.subr.mxu0 0.0
        %1010 = vmatpush1.msra.mxu0 %v989
        %1011 = vmatprep.subr.mxu0 0.0
        %1012 = vmatpush1.msra.mxu0 %v988
        %1013 = vmatprep.subr.mxu0 0.0
        %1014 = vmatpush1.msra.mxu0 %v987
        %1015 = vmatprep.subr.mxu0 0.0
        %1016 = vmatpush1.msra.mxu0 %v986
        %1017 = vmatprep.subr.mxu0 0.0
        %1018 = vmatpush1.msra.mxu0 %v985
        %1019 = vmatprep.subr.mxu0 0.0
        %1020 = vmatpush1.msra.mxu0 %v984
        %1021 = vmatprep.subr.mxu0 0.0
        %1022 = vmatpush1.msra.mxu0 %v983
        %1023 = vmatprep.subr.mxu0 0.0
        %1024 = vmatpush1.msra.mxu0 %v982
        %1025 = vmatprep.subr.mxu0 0.0
        %1026 = vmatpush1.msra.mxu0 %v981
        %1027 = vmatprep.subr.mxu0 0.0
        %1028 = vmatpush1.msra.mxu0 %v980
        %1029 = vmatprep.subr.mxu0 0.0
        %1030 = vmatpush1.msra.mxu0 %v979
        %1031 = vmatprep.subr.mxu0 0.0
        %1032 = vmatpush1.msra.mxu0 %v978
        %1033 = vmatprep.subr.mxu0 0.0
        %1034 = vmatpush1.msra.mxu0 %v977
        %1035 = vmatprep.subr.mxu0 0.0
        %1036 = vmatpush1.msra.mxu0 %v976
        %1037 = vmatprep.subr.mxu0 0.0
        %1038 = vmatpush1.msra.mxu0 %v975
        %1039 = vmatprep.subr.mxu0 0.0
        %1040 = vmatpush2.msra.mxu0 %v1006
        %1041 = vmatprep.subr.mxu0 0.0
        %1042 = vmatpush2.msra.mxu0 %v1005
        %1043 = vmatprep.subr.mxu0 0.0
        %1044 = vmatpush2.msra.mxu0 %v1004
        %1045 = vmatprep.subr.mxu0 0.0
        %1046 = vmatpush2.msra.mxu0 %v1003
        %1047 = vmatprep.subr.mxu0 0.0
        %1048 = vmatpush2.msra.mxu0 %v1002
        %1049 = vmatprep.subr.mxu0 0.0
        %1050 = vmatpush2.msra.mxu0 %v1001
        %1051 = vmatprep.subr.mxu0 0.0
        %1052 = vmatpush2.msra.mxu0 %v1000
        %1053 = vmatprep.subr.mxu0 0.0
        %1054 = vmatpush2.msra.mxu0 %v999
        %1055 = vmatprep.subr.mxu0 0.0
        %1056 = vmatpush2.msra.mxu0 %v998
        %1057 = vmatprep.subr.mxu0 0.0
        %1058 = vmatpush2.msra.mxu0 %v997
        %1059 = vmatprep.subr.mxu0 0.0
        %1060 = vmatpush2.msra.mxu0 %v996
        %1061 = vmatprep.subr.mxu0 0.0
        %1062 = vmatpush2.msra.mxu0 %v995
        %1063 = vmatprep.subr.mxu0 0.0
        %1064 = vmatpush2.msra.mxu0 %v994
        %1065 = vmatprep.subr.mxu0 0.0
        %1066 = vmatpush2.msra.mxu0 %v993
        %1067 = vmatprep.subr.mxu0 0.0
        %1068 = vmatpush2.msra.mxu0 %v992
        %1069 = vmatprep.subr.mxu0 0.0
        %1070 = vmatpush2.msra.mxu0 %v991
        %1071 = vmatprep.mubr.f32.mxu0 %v436
        %1072 = vmatmul.mubr.f32.gmra.mxu0 %v751
        %v1073 = vpop.f32.mrf.mxu0
        %v1074 = vadd.f32 %v812, %v1073
        %v1075 = vpop.f32.mrf.mxu0
        %1076 = vmatprep.mubr.f32.mxu0 %v437
        %1077 = vmatmul.mubr.f32.gmra.mxu0 %v752
        %v1078 = vpop.f32.mrf.mxu0
        %v1079 = vadd.f32 %v812, %v1078
        %v1080 = vpop.f32.mrf.mxu0
        %1081 = vmatprep.mubr.f32.mxu0 %v438
        %1082 = vmatmul.mubr.f32.gmra.mxu0 %v753
        %v1083 = vpop.f32.mrf.mxu0
        %v1084 = vadd.f32 %v812, %v1083
        %v1085 = vpop.f32.mrf.mxu0
        %1086 = vmatprep.mubr.f32.mxu0 %v439
        %1087 = vmatmul.mubr.f32.gmra.mxu0 %v754
        %v1088 = vpop.f32.mrf.mxu0
        %v1089 = vadd.f32 %v812, %v1088
        %v1090 = vpop.f32.mrf.mxu0
        %1091 = vmatprep.mubr.f32.mxu0 %v440
        %1092 = vmatmul.mubr.f32.gmra.mxu0 %v755
        %v1093 = vpop.f32.mrf.mxu0
        %v1094 = vadd.f32 %v812, %v1093
        %v1095 = vpop.f32.mrf.mxu0
        %1096 = vmatprep.mubr.f32.mxu0 %v441
        %1097 = vmatmul.mubr.f32.gmra.mxu0 %v756
        %v1098 = vpop.f32.mrf.mxu0
        %v1099 = vadd.f32 %v812, %v1098
        %v1100 = vpop.f32.mrf.mxu0
        %1101 = vmatprep.mubr.f32.mxu0 %v442
        %1102 = vmatmul.mubr.f32.gmra.mxu0 %v757
        %v1103 = vpop.f32.mrf.mxu0
        %v1104 = vadd.f32 %v812, %v1103
        %v1105 = vpop.f32.mrf.mxu0
        %1106 = vmatprep.mubr.f32.mxu0 %v443
        %1107 = vmatmul.mubr.f32.gmra.mxu0 %v758
        %v1108 = vpop.f32.mrf.mxu0
        %v1109 = vadd.f32 %v812, %v1108
        %v1110 = vpop.f32.mrf.mxu0
        %1111 = vmatprep.mubr.f32.mxu0 %v444
        %1112 = vmatmul.mubr.f32.gmra.mxu0 %v759
        %v1113 = vpop.f32.mrf.mxu0
        %v1114 = vadd.f32 %v812, %v1113
        %v1115 = vpop.f32.mrf.mxu0
        %1116 = vmatprep.mubr.f32.mxu0 %v445
        %1117 = vmatmul.mubr.f32.gmra.mxu0 %v760
        %v1118 = vpop.f32.mrf.mxu0
        %v1119 = vadd.f32 %v812, %v1118
        %v1120 = vpop.f32.mrf.mxu0
        %1121 = vmatprep.mubr.f32.mxu0 %v446
        %1122 = vmatmul.mubr.f32.gmra.mxu0 %v761
        %v1123 = vpop.f32.mrf.mxu0
        %v1124 = vadd.f32 %v812, %v1123
        %v1125 = vpop.f32.mrf.mxu0
        %1126 = vmatprep.mubr.f32.mxu0 %v447
        %1127 = vmatmul.mubr.f32.gmra.mxu0 %v762
        %v1128 = vpop.f32.mrf.mxu0
        %v1129 = vadd.f32 %v812, %v1128
        %v1130 = vpop.f32.mrf.mxu0
        %1131 = vmatprep.mubr.f32.mxu0 %v448
        %1132 = vmatmul.mubr.f32.gmra.mxu0 %v763
        %v1133 = vpop.f32.mrf.mxu0
        %v1134 = vadd.f32 %v812, %v1133
        %v1135 = vpop.f32.mrf.mxu0
        %1136 = vmatprep.mubr.f32.mxu0 %v449
        %1137 = vmatmul.mubr.f32.gmra.mxu0 %v764
        %v1138 = vpop.f32.mrf.mxu0
        %v1139 = vadd.f32 %v812, %v1138
        %v1140 = vpop.f32.mrf.mxu0
        %1141 = vmatprep.mubr.f32.mxu0 %v450
        %1142 = vmatmul.mubr.f32.gmra.mxu0 %v765
        %v1143 = vpop.f32.mrf.mxu0
        %v1144 = vadd.f32 %v812, %v1143
        %v1145 = vpop.f32.mrf.mxu0
        %1146 = vmatprep.mubr.f32.mxu0 %v451
        %1147 = vmatmul.mubr.f32.gmra.mxu0 %v766
        %v1148 = vpop.f32.mrf.mxu0
        %v1149 = vadd.f32 %v812, %v1148
        %v1150 = vpop.f32.mrf.mxu0
        %1151 = vdwg.mxu0
        %1152 = vst [vmem:[%s429 + $0x8] sm:$0xff] %v1074
        %1153 = vst [vmem:[%s429 + $0x18] sm:$0xff] %v1079
        %1154 = vst [vmem:[%s429 + $0x48] sm:$0xff] %v1084
        %1155 = vst [vmem:[%s429 + $0x58] sm:$0xff] %v1089
        %1156 = vst [vmem:[%s429 + $0x88] sm:$0xff] %v1094
        %1157 = vst [vmem:[%s429 + $0x98] sm:$0xff] %v1099
        %1158 = vst [vmem:[%s429 + $0xc8] sm:$0xff] %v1104
        %1159 = vst [vmem:[%s429 + $0xd8] sm:$0xff] %v1109
        %1160 = vst [vmem:[%s429 + $0x108] sm:$0xff] %v1114
        %1161 = vst [vmem:[%s429 + $0x118] sm:$0xff] %v1119
        %1162 = vst [vmem:[%s429 + $0x148] sm:$0xff] %v1124
        %1163 = vst [vmem:[%s429 + $0x158] sm:$0xff] %v1129
        %1164 = vst [vmem:[%s429 + $0x188] sm:$0xff] %v1134
        %1165 = vst [vmem:[%s429 + $0x198] sm:$0xff] %v1139
        %1166 = vst [vmem:[%s429 + $0x1c8] sm:$0xff] %v1144
        %1167 = vst [vmem:[%s429 + $0x1d8] sm:$0xff] %v1149
        %v1168 = vld [vmem:[#allocation10] sm:$0xff]
        %v1169 = vld [vmem:[#allocation10 + $0x8] sm:$0xff]
        %v1170 = vld [vmem:[#allocation10 + $0x10] sm:$0xff]
        %v1171 = vld [vmem:[#allocation10 + $0x18] sm:$0xff]
        %v1172 = vld [vmem:[#allocation10 + $0x20] sm:$0xff]
        %v1173 = vld [vmem:[#allocation10 + $0x28] sm:$0xff]
        %v1174 = vld [vmem:[#allocation10 + $0x30] sm:$0xff]
        %v1175 = vld [vmem:[#allocation10 + $0x38] sm:$0xff]
        %v1176 = vld [vmem:[#allocation10 + $0x40] sm:$0xff]
        %v1177 = vld [vmem:[#allocation10 + $0x48] sm:$0xff]
        %v1178 = vld [vmem:[#allocation10 + $0x50] sm:$0xff]
        %v1179 = vld [vmem:[#allocation10 + $0x58] sm:$0xff]
        %v1180 = vld [vmem:[#allocation10 + $0x60] sm:$0xff]
        %v1181 = vld [vmem:[#allocation10 + $0x68] sm:$0xff]
        %v1182 = vld [vmem:[#allocation10 + $0x70] sm:$0xff]
        %v1183 = vld [vmem:[#allocation10 + $0x78] sm:$0xff]
        %v1184 = vld [vmem:[#allocation10 + $0x80] sm:$0xff]
        %v1185 = vld [vmem:[#allocation10 + $0x88] sm:$0xff]
        %v1186 = vld [vmem:[#allocation10 + $0x90] sm:$0xff]
        %v1187 = vld [vmem:[#allocation10 + $0x98] sm:$0xff]
        %v1188 = vld [vmem:[#allocation10 + $0xa0] sm:$0xff]
        %v1189 = vld [vmem:[#allocation10 + $0xa8] sm:$0xff]
        %v1190 = vld [vmem:[#allocation10 + $0xb0] sm:$0xff]
        %v1191 = vld [vmem:[#allocation10 + $0xb8] sm:$0xff]
        %v1192 = vld [vmem:[#allocation10 + $0xc0] sm:$0xff]
        %v1193 = vld [vmem:[#allocation10 + $0xc8] sm:$0xff]
        %v1194 = vld [vmem:[#allocation10 + $0xd0] sm:$0xff]
        %v1195 = vld [vmem:[#allocation10 + $0xd8] sm:$0xff]
        %v1196 = vld [vmem:[#allocation10 + $0xe0] sm:$0xff]
        %v1197 = vld [vmem:[#allocation10 + $0xe8] sm:$0xff]
        %v1198 = vld [vmem:[#allocation10 + $0xf0] sm:$0xff]
        %v1199 = vld [vmem:[#allocation10 + $0xf8] sm:$0xff]
        %1200 = vmatprep.subr.mxu0 0.0
        %1201 = vmatpush1.msra.mxu0 %v1183
        %1202 = vmatprep.subr.mxu0 0.0
        %1203 = vmatpush1.msra.mxu0 %v1182
        %1204 = vmatprep.subr.mxu0 0.0
        %1205 = vmatpush1.msra.mxu0 %v1181
        %1206 = vmatprep.subr.mxu0 0.0
        %1207 = vmatpush1.msra.mxu0 %v1180
        %1208 = vmatprep.subr.mxu0 0.0
        %1209 = vmatpush1.msra.mxu0 %v1179
        %1210 = vmatprep.subr.mxu0 0.0
        %1211 = vmatpush1.msra.mxu0 %v1178
        %1212 = vmatprep.subr.mxu0 0.0
        %1213 = vmatpush1.msra.mxu0 %v1177
        %1214 = vmatprep.subr.mxu0 0.0
        %1215 = vmatpush1.msra.mxu0 %v1176
        %1216 = vmatprep.subr.mxu0 0.0
        %1217 = vmatpush1.msra.mxu0 %v1175
        %1218 = vmatprep.subr.mxu0 0.0
        %1219 = vmatpush1.msra.mxu0 %v1174
        %1220 = vmatprep.subr.mxu0 0.0
        %1221 = vmatpush1.msra.mxu0 %v1173
        %1222 = vmatprep.subr.mxu0 0.0
        %1223 = vmatpush1.msra.mxu0 %v1172
        %1224 = vmatprep.subr.mxu0 0.0
        %1225 = vmatpush1.msra.mxu0 %v1171
        %1226 = vmatprep.subr.mxu0 0.0
        %1227 = vmatpush1.msra.mxu0 %v1170
        %1228 = vmatprep.subr.mxu0 0.0
        %1229 = vmatpush1.msra.mxu0 %v1169
        %1230 = vmatprep.subr.mxu0 0.0
        %1231 = vmatpush1.msra.mxu0 %v1168
        %1232 = vmatprep.subr.mxu0 0.0
        %1233 = vmatpush2.msra.mxu0 %v1199
        %1234 = vmatprep.subr.mxu0 0.0
        %1235 = vmatpush2.msra.mxu0 %v1198
        %1236 = vmatprep.subr.mxu0 0.0
        %1237 = vmatpush2.msra.mxu0 %v1197
        %1238 = vmatprep.subr.mxu0 0.0
        %1239 = vmatpush2.msra.mxu0 %v1196
        %1240 = vmatprep.subr.mxu0 0.0
        %1241 = vmatpush2.msra.mxu0 %v1195
        %1242 = vmatprep.subr.mxu0 0.0
        %1243 = vmatpush2.msra.mxu0 %v1194
        %1244 = vmatprep.subr.mxu0 0.0
        %1245 = vmatpush2.msra.mxu0 %v1193
        %1246 = vmatprep.subr.mxu0 0.0
        %1247 = vmatpush2.msra.mxu0 %v1192
        %1248 = vmatprep.subr.mxu0 0.0
        %1249 = vmatpush2.msra.mxu0 %v1191
        %1250 = vmatprep.subr.mxu0 0.0
        %1251 = vmatpush2.msra.mxu0 %v1190
        %1252 = vmatprep.subr.mxu0 0.0
        %1253 = vmatpush2.msra.mxu0 %v1189
        %1254 = vmatprep.subr.mxu0 0.0
        %1255 = vmatpush2.msra.mxu0 %v1188
        %1256 = vmatprep.subr.mxu0 0.0
        %1257 = vmatpush2.msra.mxu0 %v1187
        %1258 = vmatprep.subr.mxu0 0.0
        %1259 = vmatpush2.msra.mxu0 %v1186
        %1260 = vmatprep.subr.mxu0 0.0
        %1261 = vmatpush2.msra.mxu0 %v1185
        %1262 = vmatprep.subr.mxu0 0.0
        %1263 = vmatpush2.msra.mxu0 %v1184
        %1264 = vmatprep.mubr.f32.mxu0 %v438
        %1265 = vmatmul.mubr.f32.gmra.mxu0 %v436
        %v1266 = vpop.f32.mrf.mxu0
        %v1267 = vadd.f32 %v812, %v1266
        %v1268 = vpop.f32.mrf.mxu0
        %1269 = vmatprep.mubr.f32.mxu0 %v439
        %1270 = vmatmul.mubr.f32.gmra.mxu0 %v437
        %v1271 = vpop.f32.mrf.mxu0
        %v1272 = vadd.f32 %v812, %v1271
        %v1273 = vpop.f32.mrf.mxu0
        %1274 = vmatprep.mubr.f32.mxu0 %v440
        %1275 = vmatmul.mubr.f32.gmra.mxu0 %v438
        %v1276 = vpop.f32.mrf.mxu0
        %v1277 = vadd.f32 %v812, %v1276
        %v1278 = vpop.f32.mrf.mxu0
        %1279 = vmatprep.mubr.f32.mxu0 %v441
        %1280 = vmatmul.mubr.f32.gmra.mxu0 %v439
        %v1281 = vpop.f32.mrf.mxu0
        %v1282 = vadd.f32 %v812, %v1281
        %v1283 = vpop.f32.mrf.mxu0
        %1284 = vmatprep.mubr.f32.mxu0 %v442
        %1285 = vmatmul.mubr.f32.gmra.mxu0 %v440
        %v1286 = vpop.f32.mrf.mxu0
        %v1287 = vadd.f32 %v812, %v1286
        %v1288 = vpop.f32.mrf.mxu0
        %1289 = vmatprep.mubr.f32.mxu0 %v443
        %1290 = vmatmul.mubr.f32.gmra.mxu0 %v441
        %v1291 = vpop.f32.mrf.mxu0
        %v1292 = vadd.f32 %v812, %v1291
        %v1293 = vpop.f32.mrf.mxu0
        %1294 = vmatprep.mubr.f32.mxu0 %v444
        %1295 = vmatmul.mubr.f32.gmra.mxu0 %v442
        %v1296 = vpop.f32.mrf.mxu0
        %v1297 = vadd.f32 %v812, %v1296
        %v1298 = vpop.f32.mrf.mxu0
        %1299 = vmatprep.mubr.f32.mxu0 %v445
        %1300 = vmatmul.mubr.f32.gmra.mxu0 %v443
        %v1301 = vpop.f32.mrf.mxu0
        %v1302 = vadd.f32 %v812, %v1301
        %v1303 = vpop.f32.mrf.mxu0
        %1304 = vmatprep.mubr.f32.mxu0 %v446
        %1305 = vmatmul.mubr.f32.gmra.mxu0 %v444
        %v1306 = vpop.f32.mrf.mxu0
        %v1307 = vadd.f32 %v812, %v1306
        %v1308 = vpop.f32.mrf.mxu0
        %1309 = vmatprep.mubr.f32.mxu0 %v447
        %1310 = vmatmul.mubr.f32.gmra.mxu0 %v445
        %v1311 = vpop.f32.mrf.mxu0
        %v1312 = vadd.f32 %v812, %v1311
        %v1313 = vpop.f32.mrf.mxu0
        %1314 = vmatprep.mubr.f32.mxu0 %v448
        %1315 = vmatmul.mubr.f32.gmra.mxu0 %v446
        %v1316 = vpop.f32.mrf.mxu0
        %v1317 = vadd.f32 %v812, %v1316
        %v1318 = vpop.f32.mrf.mxu0
        %1319 = vmatprep.mubr.f32.mxu0 %v449
        %1320 = vmatmul.mubr.f32.gmra.mxu0 %v447
        %v1321 = vpop.f32.mrf.mxu0
        %v1322 = vadd.f32 %v812, %v1321
        %v1323 = vpop.f32.mrf.mxu0
        %1324 = vmatprep.mubr.f32.mxu0 %v450
        %1325 = vmatmul.mubr.f32.gmra.mxu0 %v448
        %v1326 = vpop.f32.mrf.mxu0
        %v1327 = vadd.f32 %v812, %v1326
        %v1328 = vpop.f32.mrf.mxu0
        %1329 = vmatprep.mubr.f32.mxu0 %v451
        %1330 = vmatmul.mubr.f32.gmra.mxu0 %v449
        %v1331 = vpop.f32.mrf.mxu0
        %v1332 = vadd.f32 %v812, %v1331
        %v1333 = vpop.f32.mrf.mxu0
        %1334 = vmatprep.mubr.f32.mxu0 %v457
        %1335 = vmatmul.mubr.f32.gmra.mxu0 %v450
        %v1336 = vpop.f32.mrf.mxu0
        %v1337 = vadd.f32 %v812, %v1336
        %v1338 = vpop.f32.mrf.mxu0
        %1339 = vmatprep.mubr.f32.mxu0 %v458
        %1340 = vmatmul.mubr.f32.gmra.mxu0 %v451
        %v1341 = vpop.f32.mrf.mxu0
        %v1342 = vadd.f32 %v812, %v1341
        %v1343 = vpop.f32.mrf.mxu0
        %1344 = vdwg.mxu0
        %s1345 = scalar_lea.vmem %s429, 32 [#allocation13]
        %1346 = vst [vmem:[%s1345] sm:$0xff] %v1267
        %1347 = vst [vmem:[%s1345 + $0x10] sm:$0xff] %v1272
        %1348 = vst [vmem:[%s1345 + $0x40] sm:$0xff] %v1277
        %1349 = vst [vmem:[%s1345 + $0x50] sm:$0xff] %v1282
        %1350 = vst [vmem:[%s1345 + $0x80] sm:$0xff] %v1287
        %1351 = vst [vmem:[%s1345 + $0x90] sm:$0xff] %v1292
        %1352 = vst [vmem:[%s1345 + $0xc0] sm:$0xff] %v1297
        %1353 = vst [vmem:[%s1345 + $0xd0] sm:$0xff] %v1302
        %1354 = vst [vmem:[%s1345 + $0x100] sm:$0xff] %v1307
        %1355 = vst [vmem:[%s1345 + $0x110] sm:$0xff] %v1312
        %1356 = vst [vmem:[%s1345 + $0x140] sm:$0xff] %v1317
        %1357 = vst [vmem:[%s1345 + $0x150] sm:$0xff] %v1322
        %1358 = vst [vmem:[%s1345 + $0x180] sm:$0xff] %v1327
        %1359 = vst [vmem:[%s1345 + $0x190] sm:$0xff] %v1332
        %1360 = vst [vmem:[%s1345 + $0x1c0] sm:$0xff] %v1337
        %1361 = vst [vmem:[%s1345 + $0x1d0] sm:$0xff] %v1342
        %v1362 = vld [vmem:[#allocation11] sm:$0xff]
        %v1363 = vld [vmem:[#allocation11 + $0x8] sm:$0xff]
        %v1364 = vld [vmem:[#allocation11 + $0x10] sm:$0xff]
        %v1365 = vld [vmem:[#allocation11 + $0x18] sm:$0xff]
        %v1366 = vld [vmem:[#allocation11 + $0x20] sm:$0xff]
        %v1367 = vld [vmem:[#allocation11 + $0x28] sm:$0xff]
        %v1368 = vld [vmem:[#allocation11 + $0x30] sm:$0xff]
        %v1369 = vld [vmem:[#allocation11 + $0x38] sm:$0xff]
        %v1370 = vld [vmem:[#allocation11 + $0x40] sm:$0xff]
        %v1371 = vld [vmem:[#allocation11 + $0x48] sm:$0xff]
        %v1372 = vld [vmem:[#allocation11 + $0x50] sm:$0xff]
        %v1373 = vld [vmem:[#allocation11 + $0x58] sm:$0xff]
        %v1374 = vld [vmem:[#allocation11 + $0x60] sm:$0xff]
        %v1375 = vld [vmem:[#allocation11 + $0x68] sm:$0xff]
        %v1376 = vld [vmem:[#allocation11 + $0x70] sm:$0xff]
        %v1377 = vld [vmem:[#allocation11 + $0x78] sm:$0xff]
        %v1378 = vld [vmem:[#allocation11 + $0x80] sm:$0xff]
        %v1379 = vld [vmem:[#allocation11 + $0x88] sm:$0xff]
        %v1380 = vld [vmem:[#allocation11 + $0x90] sm:$0xff]
        %v1381 = vld [vmem:[#allocation11 + $0x98] sm:$0xff]
        %v1382 = vld [vmem:[#allocation11 + $0xa0] sm:$0xff]
        %v1383 = vld [vmem:[#allocation11 + $0xa8] sm:$0xff]
        %v1384 = vld [vmem:[#allocation11 + $0xb0] sm:$0xff]
        %v1385 = vld [vmem:[#allocation11 + $0xb8] sm:$0xff]
        %v1386 = vld [vmem:[#allocation11 + $0xc0] sm:$0xff]
        %v1387 = vld [vmem:[#allocation11 + $0xc8] sm:$0xff]
        %v1388 = vld [vmem:[#allocation11 + $0xd0] sm:$0xff]
        %v1389 = vld [vmem:[#allocation11 + $0xd8] sm:$0xff]
        %v1390 = vld [vmem:[#allocation11 + $0xe0] sm:$0xff]
        %v1391 = vld [vmem:[#allocation11 + $0xe8] sm:$0xff]
        %v1392 = vld [vmem:[#allocation11 + $0xf0] sm:$0xff]
        %v1393 = vld [vmem:[#allocation11 + $0xf8] sm:$0xff]
        %v1394 = vld [vmem:[#allocation11 + $0x100] sm:$0xff]
        %v1395 = vld [vmem:[#allocation11 + $0x108] sm:$0xff]
        %v1396 = vld [vmem:[#allocation11 + $0x110] sm:$0xff]
        %v1397 = vld [vmem:[#allocation11 + $0x118] sm:$0xff]
        %v1398 = vld [vmem:[#allocation11 + $0x120] sm:$0xff]
        %v1399 = vld [vmem:[#allocation11 + $0x128] sm:$0xff]
        %v1400 = vld [vmem:[#allocation11 + $0x130] sm:$0xff]
        %v1401 = vld [vmem:[#allocation11 + $0x138] sm:$0xff]
        %v1402 = vld [vmem:[#allocation11 + $0x140] sm:$0xff]
        %v1403 = vld [vmem:[#allocation11 + $0x148] sm:$0xff]
        %v1404 = vld [vmem:[#allocation11 + $0x150] sm:$0xff]
        %v1405 = vld [vmem:[#allocation11 + $0x158] sm:$0xff]
        %v1406 = vld [vmem:[#allocation11 + $0x160] sm:$0xff]
        %v1407 = vld [vmem:[#allocation11 + $0x168] sm:$0xff]
        %v1408 = vld [vmem:[#allocation11 + $0x170] sm:$0xff]
        %v1409 = vld [vmem:[#allocation11 + $0x178] sm:$0xff]
        %v1410 = vld [vmem:[#allocation11 + $0x180] sm:$0xff]
        %v1411 = vld [vmem:[#allocation11 + $0x188] sm:$0xff]
        %v1412 = vld [vmem:[#allocation11 + $0x190] sm:$0xff]
        %v1413 = vld [vmem:[#allocation11 + $0x198] sm:$0xff]
        %v1414 = vld [vmem:[#allocation11 + $0x1a0] sm:$0xff]
        %v1415 = vld [vmem:[#allocation11 + $0x1a8] sm:$0xff]
        %v1416 = vld [vmem:[#allocation11 + $0x1b0] sm:$0xff]
        %v1417 = vld [vmem:[#allocation11 + $0x1b8] sm:$0xff]
        %v1418 = vld [vmem:[#allocation11 + $0x1c0] sm:$0xff]
        %v1419 = vld [vmem:[#allocation11 + $0x1c8] sm:$0xff]
        %v1420 = vld [vmem:[#allocation11 + $0x1d0] sm:$0xff]
        %v1421 = vld [vmem:[#allocation11 + $0x1d8] sm:$0xff]
        %v1422 = vld [vmem:[#allocation11 + $0x1e0] sm:$0xff]
        %v1423 = vld [vmem:[#allocation11 + $0x1e8] sm:$0xff]
        %v1424 = vld [vmem:[#allocation11 + $0x1f0] sm:$0xff]
        %v1425 = vld [vmem:[#allocation11 + $0x1f8] sm:$0xff]
        %1426 = vmatprep.subr.mxu0 0.0
        %1427 = vmatpush1.msra.mxu0 %v1377
        %1428 = vmatprep.subr.mxu0 0.0
        %1429 = vmatpush1.msra.mxu0 %v1376
        %1430 = vmatprep.subr.mxu0 0.0
        %1431 = vmatpush1.msra.mxu0 %v1375
        %1432 = vmatprep.subr.mxu0 0.0
        %1433 = vmatpush1.msra.mxu0 %v1374
        %1434 = vmatprep.subr.mxu0 0.0
        %1435 = vmatpush1.msra.mxu0 %v1373
        %1436 = vmatprep.subr.mxu0 0.0
        %1437 = vmatpush1.msra.mxu0 %v1372
        %1438 = vmatprep.subr.mxu0 0.0
        %1439 = vmatpush1.msra.mxu0 %v1371
        %1440 = vmatprep.subr.mxu0 0.0
        %1441 = vmatpush1.msra.mxu0 %v1370
        %1442 = vmatprep.subr.mxu0 0.0
        %1443 = vmatpush1.msra.mxu0 %v1369
        %1444 = vmatprep.subr.mxu0 0.0
        %1445 = vmatpush1.msra.mxu0 %v1368
        %1446 = vmatprep.subr.mxu0 0.0
        %1447 = vmatpush1.msra.mxu0 %v1367
        %1448 = vmatprep.subr.mxu0 0.0
        %1449 = vmatpush1.msra.mxu0 %v1366
        %1450 = vmatprep.subr.mxu0 0.0
        %1451 = vmatpush1.msra.mxu0 %v1365
        %1452 = vmatprep.subr.mxu0 0.0
        %1453 = vmatpush1.msra.mxu0 %v1364
        %1454 = vmatprep.subr.mxu0 0.0
        %1455 = vmatpush1.msra.mxu0 %v1363
        %1456 = vmatprep.subr.mxu0 0.0
        %1457 = vmatpush1.msra.mxu0 %v1362
        %1458 = vmatprep.subr.mxu0 0.0
        %1459 = vmatpush2.msra.mxu0 %v1393
        %1460 = vmatprep.subr.mxu0 0.0
        %1461 = vmatpush2.msra.mxu0 %v1392
        %1462 = vmatprep.subr.mxu0 0.0
        %1463 = vmatpush2.msra.mxu0 %v1391
        %1464 = vmatprep.subr.mxu0 0.0
        %1465 = vmatpush2.msra.mxu0 %v1390
        %1466 = vmatprep.subr.mxu0 0.0
        %1467 = vmatpush2.msra.mxu0 %v1389
        %1468 = vmatprep.subr.mxu0 0.0
        %1469 = vmatpush2.msra.mxu0 %v1388
        %1470 = vmatprep.subr.mxu0 0.0
        %1471 = vmatpush2.msra.mxu0 %v1387
        %1472 = vmatprep.subr.mxu0 0.0
        %1473 = vmatpush2.msra.mxu0 %v1386
        %1474 = vmatprep.subr.mxu0 0.0
        %1475 = vmatpush2.msra.mxu0 %v1385
        %1476 = vmatprep.subr.mxu0 0.0
        %1477 = vmatpush2.msra.mxu0 %v1384
        %1478 = vmatprep.subr.mxu0 0.0
        %1479 = vmatpush2.msra.mxu0 %v1383
        %1480 = vmatprep.subr.mxu0 0.0
        %1481 = vmatpush2.msra.mxu0 %v1382
        %1482 = vmatprep.subr.mxu0 0.0
        %1483 = vmatpush2.msra.mxu0 %v1381
        %1484 = vmatprep.subr.mxu0 0.0
        %1485 = vmatpush2.msra.mxu0 %v1380
        %1486 = vmatprep.subr.mxu0 0.0
        %1487 = vmatpush2.msra.mxu0 %v1379
        %1488 = vmatprep.subr.mxu0 0.0
        %1489 = vmatpush2.msra.mxu0 %v1378
        %1490 = vmatprep.mubr.f32.mxu0 %v436
        %1491 = vmatmul.mubr.f32.gmra.mxu0 %v751
        %v1492 = vpop.f32.mrf.mxu0
        %v1493 = vadd.f32 %v812, %v1492
        %v1494 = vpop.f32.mrf.mxu0
        %1495 = vmatprep.mubr.f32.mxu0 %v437
        %1496 = vmatmul.mubr.f32.gmra.mxu0 %v752
        %v1497 = vpop.f32.mrf.mxu0
        %v1498 = vadd.f32 %v812, %v1497
        %v1499 = vpop.f32.mrf.mxu0
        %1500 = vmatprep.mubr.f32.mxu0 %v438
        %1501 = vmatmul.mubr.f32.gmra.mxu0 %v753
        %v1502 = vpop.f32.mrf.mxu0
        %v1503 = vadd.f32 %v812, %v1502
        %v1504 = vpop.f32.mrf.mxu0
        %1505 = vmatprep.mubr.f32.mxu0 %v439
        %1506 = vmatmul.mubr.f32.gmra.mxu0 %v754
        %v1507 = vpop.f32.mrf.mxu0
        %v1508 = vadd.f32 %v812, %v1507
        %v1509 = vpop.f32.mrf.mxu0
        %1510 = vmatprep.mubr.f32.mxu0 %v440
        %1511 = vmatmul.mubr.f32.gmra.mxu0 %v755
        %v1512 = vpop.f32.mrf.mxu0
        %v1513 = vadd.f32 %v812, %v1512
        %v1514 = vpop.f32.mrf.mxu0
        %1515 = vmatprep.mubr.f32.mxu0 %v441
        %1516 = vmatmul.mubr.f32.gmra.mxu0 %v756
        %v1517 = vpop.f32.mrf.mxu0
        %v1518 = vadd.f32 %v812, %v1517
        %v1519 = vpop.f32.mrf.mxu0
        %1520 = vmatprep.mubr.f32.mxu0 %v442
        %1521 = vmatmul.mubr.f32.gmra.mxu0 %v757
        %v1522 = vpop.f32.mrf.mxu0
        %v1523 = vadd.f32 %v812, %v1522
        %v1524 = vpop.f32.mrf.mxu0
        %1525 = vmatprep.mubr.f32.mxu0 %v443
        %1526 = vmatmul.mubr.f32.gmra.mxu0 %v758
        %v1527 = vpop.f32.mrf.mxu0
        %v1528 = vadd.f32 %v812, %v1527
        %v1529 = vpop.f32.mrf.mxu0
        %1530 = vmatprep.mubr.f32.mxu0 %v444
        %1531 = vmatmul.mubr.f32.gmra.mxu0 %v759
        %v1532 = vpop.f32.mrf.mxu0
        %v1533 = vadd.f32 %v812, %v1532
        %v1534 = vpop.f32.mrf.mxu0
        %1535 = vmatprep.mubr.f32.mxu0 %v445
        %1536 = vmatmul.mubr.f32.gmra.mxu0 %v760
        %v1537 = vpop.f32.mrf.mxu0
        %v1538 = vadd.f32 %v812, %v1537
        %v1539 = vpop.f32.mrf.mxu0
        %1540 = vmatprep.mubr.f32.mxu0 %v446
        %1541 = vmatmul.mubr.f32.gmra.mxu0 %v761
        %v1542 = vpop.f32.mrf.mxu0
        %v1543 = vadd.f32 %v812, %v1542
        %v1544 = vpop.f32.mrf.mxu0
        %1545 = vmatprep.mubr.f32.mxu0 %v447
        %1546 = vmatmul.mubr.f32.gmra.mxu0 %v762
        %v1547 = vpop.f32.mrf.mxu0
        %v1548 = vadd.f32 %v812, %v1547
        %v1549 = vpop.f32.mrf.mxu0
        %1550 = vmatprep.mubr.f32.mxu0 %v448
        %1551 = vmatmul.mubr.f32.gmra.mxu0 %v763
        %v1552 = vpop.f32.mrf.mxu0
        %v1553 = vadd.f32 %v812, %v1552
        %v1554 = vpop.f32.mrf.mxu0
        %1555 = vmatprep.mubr.f32.mxu0 %v449
        %1556 = vmatmul.mubr.f32.gmra.mxu0 %v764
        %v1557 = vpop.f32.mrf.mxu0
        %v1558 = vadd.f32 %v812, %v1557
        %v1559 = vpop.f32.mrf.mxu0
        %1560 = vmatprep.mubr.f32.mxu0 %v450
        %1561 = vmatmul.mubr.f32.gmra.mxu0 %v765
        %v1562 = vpop.f32.mrf.mxu0
        %v1563 = vadd.f32 %v812, %v1562
        %v1564 = vpop.f32.mrf.mxu0
        %1565 = vmatprep.mubr.f32.mxu0 %v451
        %1566 = vmatmul.mubr.f32.gmra.mxu0 %v766
        %v1567 = vpop.f32.mrf.mxu0
        %v1568 = vadd.f32 %v812, %v1567
        %v1569 = vpop.f32.mrf.mxu0
        %1570 = vdwg.mxu0
        %1571 = vmatprep.subr.mxu0 0.0
        %1572 = vmatpush1.msra.mxu0 %v1409
        %1573 = vmatprep.subr.mxu0 0.0
        %1574 = vmatpush1.msra.mxu0 %v1408
        %1575 = vmatprep.subr.mxu0 0.0
        %1576 = vmatpush1.msra.mxu0 %v1407
        %1577 = vmatprep.subr.mxu0 0.0
        %1578 = vmatpush1.msra.mxu0 %v1406
        %1579 = vmatprep.subr.mxu0 0.0
        %1580 = vmatpush1.msra.mxu0 %v1405
        %1581 = vmatprep.subr.mxu0 0.0
        %1582 = vmatpush1.msra.mxu0 %v1404
        %1583 = vmatprep.subr.mxu0 0.0
        %1584 = vmatpush1.msra.mxu0 %v1403
        %1585 = vmatprep.subr.mxu0 0.0
        %1586 = vmatpush1.msra.mxu0 %v1402
        %1587 = vmatprep.subr.mxu0 0.0
        %1588 = vmatpush1.msra.mxu0 %v1401
        %1589 = vmatprep.subr.mxu0 0.0
        %1590 = vmatpush1.msra.mxu0 %v1400
        %1591 = vmatprep.subr.mxu0 0.0
        %1592 = vmatpush1.msra.mxu0 %v1399
        %1593 = vmatprep.subr.mxu0 0.0
        %1594 = vmatpush1.msra.mxu0 %v1398
        %1595 = vmatprep.subr.mxu0 0.0
        %1596 = vmatpush1.msra.mxu0 %v1397
        %1597 = vmatprep.subr.mxu0 0.0
        %1598 = vmatpush1.msra.mxu0 %v1396
        %1599 = vmatprep.subr.mxu0 0.0
        %1600 = vmatpush1.msra.mxu0 %v1395
        %1601 = vmatprep.subr.mxu0 0.0
        %1602 = vmatpush1.msra.mxu0 %v1394
        %1603 = vmatprep.subr.mxu0 0.0
        %1604 = vmatpush2.msra.mxu0 %v1425
        %1605 = vmatprep.subr.mxu0 0.0
        %1606 = vmatpush2.msra.mxu0 %v1424
        %1607 = vmatprep.subr.mxu0 0.0
        %1608 = vmatpush2.msra.mxu0 %v1423
        %1609 = vmatprep.subr.mxu0 0.0
        %1610 = vmatpush2.msra.mxu0 %v1422
        %1611 = vmatprep.subr.mxu0 0.0
        %1612 = vmatpush2.msra.mxu0 %v1421
        %1613 = vmatprep.subr.mxu0 0.0
        %1614 = vmatpush2.msra.mxu0 %v1420
        %1615 = vmatprep.subr.mxu0 0.0
        %1616 = vmatpush2.msra.mxu0 %v1419
        %1617 = vmatprep.subr.mxu0 0.0
        %1618 = vmatpush2.msra.mxu0 %v1418
        %1619 = vmatprep.subr.mxu0 0.0
        %1620 = vmatpush2.msra.mxu0 %v1417
        %1621 = vmatprep.subr.mxu0 0.0
        %1622 = vmatpush2.msra.mxu0 %v1416
        %1623 = vmatprep.subr.mxu0 0.0
        %1624 = vmatpush2.msra.mxu0 %v1415
        %1625 = vmatprep.subr.mxu0 0.0
        %1626 = vmatpush2.msra.mxu0 %v1414
        %1627 = vmatprep.subr.mxu0 0.0
        %1628 = vmatpush2.msra.mxu0 %v1413
        %1629 = vmatprep.subr.mxu0 0.0
        %1630 = vmatpush2.msra.mxu0 %v1412
        %1631 = vmatprep.subr.mxu0 0.0
        %1632 = vmatpush2.msra.mxu0 %v1411
        %1633 = vmatprep.subr.mxu0 0.0
        %1634 = vmatpush2.msra.mxu0 %v1410
        %1635 = vmatprep.mubr.f32.mxu0 %v775
        %1636 = vmatmul.mubr.f32.gmra.mxu0 %v438
        %v1637 = vpop.f32.mrf.mxu0
        %v1638 = vadd.f32 %v1493, %v1637
        %v1639 = vpop.f32.mrf.mxu0
        %1640 = vmatprep.mubr.f32.mxu0 %v776
        %1641 = vmatmul.mubr.f32.gmra.mxu0 %v439
        %v1642 = vpop.f32.mrf.mxu0
        %v1643 = vadd.f32 %v1498, %v1642
        %v1644 = vpop.f32.mrf.mxu0
        %1645 = vmatprep.mubr.f32.mxu0 %v777
        %1646 = vmatmul.mubr.f32.gmra.mxu0 %v440
        %v1647 = vpop.f32.mrf.mxu0
        %v1648 = vadd.f32 %v1503, %v1647
        %v1649 = vpop.f32.mrf.mxu0
        %1650 = vmatprep.mubr.f32.mxu0 %v778
        %1651 = vmatmul.mubr.f32.gmra.mxu0 %v441
        %v1652 = vpop.f32.mrf.mxu0
        %v1653 = vadd.f32 %v1508, %v1652
        %v1654 = vpop.f32.mrf.mxu0
        %1655 = vmatprep.mubr.f32.mxu0 %v779
        %1656 = vmatmul.mubr.f32.gmra.mxu0 %v442
        %v1657 = vpop.f32.mrf.mxu0
        %v1658 = vadd.f32 %v1513, %v1657
        %v1659 = vpop.f32.mrf.mxu0
        %1660 = vmatprep.mubr.f32.mxu0 %v780
        %1661 = vmatmul.mubr.f32.gmra.mxu0 %v443
        %v1662 = vpop.f32.mrf.mxu0
        %v1663 = vadd.f32 %v1518, %v1662
        %v1664 = vpop.f32.mrf.mxu0
        %1665 = vmatprep.mubr.f32.mxu0 %v781
        %1666 = vmatmul.mubr.f32.gmra.mxu0 %v444
        %v1667 = vpop.f32.mrf.mxu0
        %v1668 = vadd.f32 %v1523, %v1667
        %v1669 = vpop.f32.mrf.mxu0
        %1670 = vmatprep.mubr.f32.mxu0 %v782
        %1671 = vmatmul.mubr.f32.gmra.mxu0 %v445
        %v1672 = vpop.f32.mrf.mxu0
        %v1673 = vadd.f32 %v1528, %v1672
        %v1674 = vpop.f32.mrf.mxu0
        %1675 = vmatprep.mubr.f32.mxu0 %v783
        %1676 = vmatmul.mubr.f32.gmra.mxu0 %v446
        %v1677 = vpop.f32.mrf.mxu0
        %v1678 = vadd.f32 %v1533, %v1677
        %v1679 = vpop.f32.mrf.mxu0
        %1680 = vmatprep.mubr.f32.mxu0 %v784
        %1681 = vmatmul.mubr.f32.gmra.mxu0 %v447
        %v1682 = vpop.f32.mrf.mxu0
        %v1683 = vadd.f32 %v1538, %v1682
        %v1684 = vpop.f32.mrf.mxu0
        %1685 = vmatprep.mubr.f32.mxu0 %v785
        %1686 = vmatmul.mubr.f32.gmra.mxu0 %v448
        %v1687 = vpop.f32.mrf.mxu0
        %v1688 = vadd.f32 %v1543, %v1687
        %v1689 = vpop.f32.mrf.mxu0
        %1690 = vmatprep.mubr.f32.mxu0 %v786
        %1691 = vmatmul.mubr.f32.gmra.mxu0 %v449
        %v1692 = vpop.f32.mrf.mxu0
        %v1693 = vadd.f32 %v1548, %v1692
        %v1694 = vpop.f32.mrf.mxu0
        %1695 = vmatprep.mubr.f32.mxu0 %v787
        %1696 = vmatmul.mubr.f32.gmra.mxu0 %v450
        %v1697 = vpop.f32.mrf.mxu0
        %v1698 = vadd.f32 %v1553, %v1697
        %v1699 = vpop.f32.mrf.mxu0
        %1700 = vmatprep.mubr.f32.mxu0 %v788
        %1701 = vmatmul.mubr.f32.gmra.mxu0 %v451
        %v1702 = vpop.f32.mrf.mxu0
        %v1703 = vadd.f32 %v1558, %v1702
        %v1704 = vpop.f32.mrf.mxu0
        %1705 = vmatprep.mubr.f32.mxu0 %v789
        %1706 = vmatmul.mubr.f32.gmra.mxu0 %v457
        %v1707 = vpop.f32.mrf.mxu0
        %v1708 = vadd.f32 %v1563, %v1707
        %v1709 = vpop.f32.mrf.mxu0
        %1710 = vmatprep.mubr.f32.mxu0 %v790
        %1711 = vmatmul.mubr.f32.gmra.mxu0 %v458
        %v1712 = vpop.f32.mrf.mxu0
        %v1713 = vadd.f32 %v1568, %v1712
        %v1714 = vpop.f32.mrf.mxu0
        %1715 = vdwg.mxu0
        %1716 = vst [vmem:[%s1345 + $0x8] sm:$0xff] %v1638
        %1717 = vst [vmem:[%s1345 + $0x18] sm:$0xff] %v1643
        %1718 = vst [vmem:[%s1345 + $0x48] sm:$0xff] %v1648
        %1719 = vst [vmem:[%s1345 + $0x58] sm:$0xff] %v1653
        %1720 = vst [vmem:[%s1345 + $0x88] sm:$0xff] %v1658
        %1721 = vst [vmem:[%s1345 + $0x98] sm:$0xff] %v1663
        %1722 = vst [vmem:[%s1345 + $0xc8] sm:$0xff] %v1668
        %1723 = vst [vmem:[%s1345 + $0xd8] sm:$0xff] %v1673
        %1724 = vst [vmem:[%s1345 + $0x108] sm:$0xff] %v1678
        %1725 = vst [vmem:[%s1345 + $0x118] sm:$0xff] %v1683
        %1726 = vst [vmem:[%s1345 + $0x148] sm:$0xff] %v1688
        %1727 = vst [vmem:[%s1345 + $0x158] sm:$0xff] %v1693
        %1728 = vst [vmem:[%s1345 + $0x188] sm:$0xff] %v1698
        %1729 = vst [vmem:[%s1345 + $0x198] sm:$0xff] %v1703
        %1730 = vst [vmem:[%s1345 + $0x1c8] sm:$0xff] %v1708
        %1731 = vst [vmem:[%s1345 + $0x1d8] sm:$0xff] %v1713
        %s1732 = sand.u32 %s220, 1
        %s1733 = scalar_lea.sflag [#allocation4], %s1732
        %s1734 = sand.u32 %s220, 1
        %s1735 = smul.addr %s1734, 512
        %s1736 = scalar_lea.vmem [#allocation13], %s1735
        // Predicated region
        $region73: #{tpu_custom_call.1} parent=47 // pred_check
          %p1737 = pneg %p230
        $region74: #{tpu_custom_call.1} parent=47 // pred_check_branch
          %1739 = sbr.rel (%p1737) target = $region76
        $region75: #{tpu_custom_call.1} parent=47 // pred_region
          %s1740 = smul.u32 8, %s34
          %s1742 = ssub.s32 8192, 8192
          %1743 = vsyncadd %s1733, %s1742
          %s1744 = smul.addr %s1740, 8
          %s1745 = smul.addr %s33, 128
          %s1746 = sadd.s32 %s1744, %s1745
          %s1747 = smul.addr %s1746, 128
          %s1748 = scalar_lea.hbm %s7, %s1747
          %s1749 = sshll.u32 %s1736, 4
          %s1750 = int_to_ptr.vmem [resolvable:$true] %s1749
          %1755 = dma.vmem_to_hbm [thread:$0]  %s1750, 8192, %s1748, %s1733, 256, 256, 16
        $region76: #{tpu_custom_call.1} parent=47 // pred_fallthru
          _
      $region48: #{tpu_custom_call.1} parent=5 // pred_fallthru
        _
      %p1756 = scmp.le.s32.totalorder 2, %s24
      // Predicated region
      $region77: #{tpu_custom_call.1} parent=5 // pred_check
        %p1757 = pneg %p1756
      $region78: #{tpu_custom_call.1} parent=5 // pred_check_branch
        %1759 = sbr.rel (%p1757) target = $region80
      $region79: #{tpu_custom_call.1} parent=5 // pred_region
        %s1760 = ssub.s32 %s24, 2
        // Predicated region
        $region81: #{tpu_custom_call.1} parent=79 // pred_check
          %p1761 = pneg %p236
        $region82: #{tpu_custom_call.1} parent=79 // pred_check_branch
          %1763 = sbr.rel (%p1761) target = $region84
        $region83: #{tpu_custom_call.1} parent=79 // pred_region
          %s1764 = sand.u32 %s221, 1
          %s1765 = scalar_lea.sflag [#allocation4], %s1764
          %s1766 = sand.u32 %s221, 1
          %s1767 = smul.addr %s1766, 512
          %s1768 = scalar_lea.vmem [#allocation13], %s1767
          %1769 = dma.done %s1765, 8192
        $region84: #{tpu_custom_call.1} parent=79 // pred_fallthru
          _
      $region80: #{tpu_custom_call.1} parent=5 // pred_fallthru
        _
    $region6: #{tpu_custom_call.1} parent=1 // loop_footer
      %s28 = sadd.s32 1, %s24
    $region7: #{tpu_custom_call.1} parent=1 // loop_footer_branch
      %23 = sbr.rel target = $region3
    $region8: #{tpu_custom_call.1} parent=1 // loop_exit
      _
    %1770 = vsyncpa [#allocation3], 1
    %s1771 = scalar_lea.sflag [#allocation3], 1
    %1772 = vsyncpa %s1771, 1
    %1773 = vsyncpa [#allocation6], 1
    %s1774 = scalar_lea.sflag [#allocation6], 1
    %1775 = vsyncpa %s1774, 1
    %1776 = vsyncpa [#allocation9], 1
    %1777 = vsyncpa [#allocation12], 1
    %1778 = vsyncpa [#allocation4], 1
    %s1779 = scalar_lea.sflag [#allocation4], 1
    %1780 = vsyncpa %s1779, 1

</llo_original>
